<compile_context>
chip_gen: v6e
topology: v6e:2x2x1
jax: 0.10.0
libtpu: 0.0.40
codegen_flags: <defaults>
</compile_context>

<pallas_src>
import jax
import jax.numpy as jnp
from jax import lax
from jax.experimental import pallas as pl
from jax.experimental.pallas import tpu as pltpu


# ----------------------------------------------------------------------------
# Kernel 1: Conv2d + BatchNorm(eval) + ReLU + MaxPool2d(2,2), fused.
# Output is (B, C_out, Hp*Wp): lane-dense (160 lanes) and already in NCHW
# flatten order, so no wrapper transpose is needed afterwards.
# ----------------------------------------------------------------------------
def _conv_bn_relu_pool_kernel(p_ref, w_ref, scale_ref, shift_ref, o_ref):
    # p_ref:     (B, 4, taps, M) im2col patches; axis 1 = position in 2x2 pool
    #            window, spatial (M = Hp*Wp) on lanes.
    # w_ref:     (C_out, taps)   conv weights, used directly as the MXU LHS.
    # scale_ref: (C_out, 1)      folded BN scale  = gamma / sqrt(var + eps)
    # shift_ref: (C_out, 1)      folded BN shift  (conv bias pre-folded in)
    # o_ref:     (B, C_out, M)
    B = p_ref.shape[0]
    C, M = o_ref.shape[1], o_ref.shape[2]
    w = w_ref[...]
    # Hoist the lane-broadcast of the per-channel affine out of the unrolled
    # loops (JAX does not CSE broadcast_in_dim).
    scale = jnp.broadcast_to(scale_ref[...], (C, M))
    shift = jnp.broadcast_to(shift_ref[...], (C, M))
    for b in range(B):                       # B is tiny; statically unrolled
        out = None
        for p in range(4):                   # 2x2 pool window, unrolled
            z = jnp.dot(w, p_ref[b, p], preferred_element_type=jnp.float32)
            z = jnp.maximum(z * scale + shift, 0.0)          # BN(eval) + ReLU
            out = z if out is None else jnp.maximum(out, z)  # MaxPool2d(2,2)
        o_ref[b] = out


# ----------------------------------------------------------------------------
# Kernel 2: Linear(K,128) + ReLU + Linear(128,10), K tiled on a 1-D grid.
# ----------------------------------------------------------------------------
def _fc_kernel(x_ref, w1_ref, b1_ref, w2_ref, b2_ref, o_ref, h_acc):
    k = pl.program_id(0)

    @pl.when(k == 0)
    def _():
        h_acc[...] = jnp.zeros_like(h_acc)

    h_acc[...] += jnp.dot(x_ref[...], w1_ref[...],
                          preferred_element_type=jnp.float32)

    @pl.when(k == pl.num_programs(0) - 1)
    def _():
        h = jnp.maximum(h_acc[...] + b1_ref[...], 0.0)        # Linear1 + ReLU
        o_ref[...] = jnp.dot(h, w2_ref[...],
                             preferred_element_type=jnp.float32) + b2_ref[...]


# ----------------------------------------------------------------------------
# Wrapper-side layout plumbing.
# ----------------------------------------------------------------------------
def _pool_window_patches(x, ksize, pad):
    """x: (B, H, W) single channel.  Returns (B, 4, kh*kw, Hp*Wp) patches with
    the pooled spatial axis last (lane axis), plus (Hp, Wp)."""
    B, H, W = x.shape
    kh, kw = ksize
    ph, pw = pad
    Hc = H + 2 * ph - kh + 1
    Wc = W + 2 * pw - kw + 1
    Hp, Wp = Hc // 2, Wc // 2
    xpad = jnp.pad(x, ((0, 0), (ph, ph), (pw, pw)))
    windows = []
    for dh in range(2):
        for dw in range(2):
            taps = []
            for i in range(kh):
                for j in range(kw):
                    sl = xpad[:, dh + i::2, dw + j::2][:, :Hp, :Wp]
                    taps.append(sl.reshape(B, Hp * Wp))
            windows.append(jnp.stack(taps, axis=1))           # (B, taps, M)
    return jnp.stack(windows, axis=1), (Hp, Wp)               # (B, 4, taps, M)


def audio_feature_net_2d_forward(x, params, *, kernel_size, tk_fc=5120,
                                 fc1_weight_dtype=jnp.float32):
    """Inference-mode forward of AudioFeatureNet2D as two fused Pallas kernels.

    x: (B, 1, H, W) float32; params use PyTorch layouts (conv_w (C,1,kh,kw),
    fc*_w (out,in)).  fc1_weight_dtype=jnp.bfloat16 halves the w1 HBM stream
    (v5e/v6e win) at ~4e-3 relative error."""
    eps = 1e-5
    B = x.shape[0]
    C_out = params['conv_w'].shape[0]
    kh, kw = kernel_size
    taps = kh * kw

    # ---- conv stage: per-batch patches + folded BN params (layout only) ----
    patches, (Hp, Wp) = _pool_window_patches(
        x[:, 0].astype(jnp.float32), (kh, kw), (1, 1))
    M = Hp * Wp
    w_mat = params['conv_w'].reshape(C_out, taps).astype(jnp.float32)
    bn_scale = (params['bn_gamma'] /
                jnp.sqrt(params['bn_var'] + eps)).astype(jnp.float32)
    # Fold conv bias into the shift:  (z + b - mean) * scale + beta
    bn_shift = (params['bn_beta'] +
                (params['conv_b'] - params['bn_mean']) * bn_scale)
    bn_scale = bn_scale.reshape(C_out, 1)
    bn_shift = bn_shift.reshape(C_out, 1).astype(jnp.float32)

    conv_cost = pl.CostEstimate(
        flops=int(B * 4 * (2 * C_out * taps * M) + B * 4 * 4 * C_out * M),
        transcendentals=0,
        bytes_accessed=int(4 * (B * 4 * taps * M + C_out * taps
                                + 2 * C_out + B * C_out * M)),
    )
    pooled = pl.pallas_call(
        _conv_bn_relu_pool_kernel,
        out_shape=jax.ShapeDtypeStruct((B, C_out, M), jnp.float32),
        in_specs=[pl.BlockSpec(memory_space=pltpu.MemorySpace.VMEM)] * 4,
        out_specs=pl.BlockSpec(memory_space=pltpu.MemorySpace.VMEM),
        cost_estimate=conv_cost,
    )(patches, w_mat, bn_scale, bn_shift)

    # PyTorch flattens NCHW: (B, C, Hp*Wp) is already in that order, so this
    # reshape is contiguous (no transpose, no extra data movement).
    flat = pooled.reshape(B, C_out * M)

    # ---- FC stage ----
    K = flat.shape[1]
    H1 = params['fc1_w'].shape[0]
    H2 = params['fc2_w'].shape[0]
    w1 = params['fc1_w'].T.astype(fc1_weight_dtype)   # (K, 128), no in-kernel T
    b1 = params['fc1_b'].reshape(1, H1).astype(jnp.float32)
    w2 = params['fc2_w'].T.astype(jnp.float32)        # (128, 10)
    b2 = params['fc2_b'].reshape(1, H2).astype(jnp.float32)

    tk = tk_fc
    if K % tk or tk % 128:
        tk = K                                         # fall back: single K block
    grid = (K // tk,)

    fc_cost = pl.CostEstimate(
        flops=int(2 * B * K * H1 + 2 * B * H1 * H2),
        transcendentals=0,
        bytes_accessed=int(4 * (B * K + H1 + H1 * H2 + H2 + B * H2)
                           + K * H1 * jnp.dtype(fc1_weight_dtype).itemsize),
    )
    out = pl.pallas_call(
        _fc_kernel,
        out_shape=jax.ShapeDtypeStruct((B, H2), jnp.float32),
        grid_spec=pltpu.PrefetchScalarGridSpec(
            num_scalar_prefetch=0,
            grid=grid,
            in_specs=[
                pl.BlockSpec((B, tk), lambda k: (0, k)),
                pl.BlockSpec((tk, H1), lambda k: (k, 0)),
                pl.BlockSpec((1, H1), lambda k: (0, 0)),
                pl.BlockSpec((H1, H2), lambda k: (0, 0)),
                pl.BlockSpec((1, H2), lambda k: (0, 0)),
            ],
            out_specs=pl.BlockSpec((B, H2), lambda k: (0, 0)),
            scratch_shapes=[pltpu.VMEM((B, H1), jnp.float32)],
        ),
        compiler_params=pltpu.CompilerParams(
            dimension_semantics=("arbitrary",)),     # K is a reduction axis
        cost_estimate=fc_cost,
    )(flat, w1, b1, w2, b2)
    return out


# ----------------------------------------------------------------------------
# Pure-JAX reference (mirrors the PyTorch module in eval mode).
# ----------------------------------------------------------------------------
def _reference_forward(x, params, *, eps=1e-5):
    w = params['conv_w'].astype(jnp.float32)
    z = lax.conv_general_dilated(
        x.astype(jnp.float32), w, window_strides=(1, 1),
        padding=((1, 1), (1, 1)),
        dimension_numbers=('NCHW', 'OIHW', 'NCHW'),
        precision=lax.Precision.HIGHEST)
    z = z + params['conv_b'][None, :, None, None]
    inv = params['bn_gamma'] / jnp.sqrt(params['bn_var'] + eps)
    z = ((z - params['bn_mean'][None, :, None, None])
         * inv[None, :, None, None] + params['bn_beta'][None, :, None, None])
    z = jnp.maximum(z, 0.0)
    B, C, Hc, Wc = z.shape
    Hp, Wp = Hc // 2, Wc // 2
    z = z[:, :, :Hp * 2, :Wp * 2].reshape(B, C, Hp, 2, Wp, 2).max(axis=(3, 5))
    z = z.reshape(B, -1)
    h = jnp.maximum(jnp.dot(z, params['fc1_w'].T, precision='highest')
                    + params['fc1_b'], 0.0)
    return jnp.dot(h, params['fc2_w'].T, precision='highest') + params['fc2_b']


if __name__ == "__main__":
    # feature_type='MFCC': input (1, 4, 161), kernel (3, 3)
    B, C_in, H, W = 2, 1, 4, 161
    ksize = (3, 3)
    C_out, H1, H2 = 64, 128, 10
    Hp = (H + 2 - ksize[0] + 1) // 2
    Wp = (W + 2 - ksize[1] + 1) // 2
    K = C_out * Hp * Wp   # 10240

    key = jax.random.PRNGKey(0)
    ks = jax.random.split(key, 11)
    x = jax.random.normal(ks[0], (B, C_in, H, W), dtype=jnp.float32)
    params = dict(
        conv_w=0.3 * jax.random.normal(ks[1], (C_out, C_in, *ksize), jnp.float32),
        conv_b=0.1 * jax.random.normal(ks[2], (C_out,), jnp.float32),
        bn_gamma=1.0 + 0.1 * jax.random.normal(ks[3], (C_out,), jnp.float32),
        bn_beta=0.1 * jax.random.normal(ks[4], (C_out,), jnp.float32),
        bn_mean=0.05 * jax.random.normal(ks[5], (C_out,), jnp.float32),
        bn_var=0.5 + jax.random.uniform(ks[6], (C_out,), jnp.float32),
        fc1_w=(1.0 / jnp.sqrt(K)) * jax.random.normal(ks[7], (H1, K), jnp.float32),
        fc1_b=0.1 * jax.random.normal(ks[8], (H1,), jnp.float32),
        fc2_w=(1.0 / jnp.sqrt(H1)) * jax.random.normal(ks[9], (H2, H1), jnp.float32),
        fc2_b=0.1 * jax.random.normal(ks[10], (H2,), jnp.float32),
    )

    out = audio_feature_net_2d_forward(x, params, kernel_size=ksize)
    jax.block_until_ready(out)

    ref = _reference_forward(x, params)
    assert out.shape == (B, H2), out.shape
    assert bool(jnp.all(jnp.isfinite(out))), "non-finite output"
    assert jnp.allclose(out, ref, rtol=2e-3, atol=2e-3), (out, ref)
    print("KERNEL_OK")
</pallas_src>

<mosaic_0001>
module attributes {stable_mosaic.version = 11 : i64} {
  func.func @_conv_bn_relu_pool_kernel(%arg0: memref<2x4x9x160xf32, #tpu.memory_space<vmem>>, %arg1: memref<64x9xf32, #tpu.memory_space<vmem>>, %arg2: memref<64x1xf32, #tpu.memory_space<vmem>>, %arg3: memref<64x1xf32, #tpu.memory_space<vmem>>, %arg4: memref<2x64x160xf32, #tpu.memory_space<vmem>>) attributes {dimension_semantics = [], scalar_prefetch = 0 : i64, scratch_operands = 0 : i64, tpu.core_type = #tpu.core_type<tc>} {
    %c0 = arith.constant 0 : index
    %c0_0 = arith.constant 0 : index
    %0 = vector.load %arg1[%c0, %c0_0] : memref<64x9xf32, #tpu.memory_space<vmem>>, vector<64x9xf32>
    %c0_1 = arith.constant 0 : index
    %c0_2 = arith.constant 0 : index
    %1 = vector.load %arg2[%c0_1, %c0_2] : memref<64x1xf32, #tpu.memory_space<vmem>>, vector<64x1xf32>
    %2 = vector.shape_cast %1 : vector<64x1xf32> to vector<64x1xf32>
    %3 = vector.broadcast %2 : vector<64x1xf32> to vector<64x160xf32>
    %c0_3 = arith.constant 0 : index
    %c0_4 = arith.constant 0 : index
    %4 = vector.load %arg3[%c0_3, %c0_4] : memref<64x1xf32, #tpu.memory_space<vmem>>, vector<64x1xf32>
    %5 = vector.shape_cast %4 : vector<64x1xf32> to vector<64x1xf32>
    %6 = vector.broadcast %5 : vector<64x1xf32> to vector<64x160xf32>
    %c0_5 = arith.constant 0 : index
    %c0_6 = arith.constant 0 : index
    %c0_7 = arith.constant 0 : index
    %c0_8 = arith.constant 0 : index
    %7 = vector.load %arg0[%c0_5, %c0_6, %c0_7, %c0_8] : memref<2x4x9x160xf32, #tpu.memory_space<vmem>>, vector<1x1x9x160xf32>
    %8 = vector.shape_cast %7 : vector<1x1x9x160xf32> to vector<9x160xf32>
    %cst = arith.constant dense<0.000000e+00> : vector<64x160xf32>
    %9 = tpu.matmul %0, %8, %cst {dimension_numbers = #tpu.dot_dimension_numbers<[1], [0], [0], [1], [0, 0, 1, 1], [], []>} : vector<64x9xf32>, vector<9x160xf32>, vector<64x160xf32> -> vector<64x160xf32>
    %10 = arith.mulf %9, %3 : vector<64x160xf32>
    %11 = arith.addf %10, %6 : vector<64x160xf32>
    %cst_9 = arith.constant 0.000000e+00 : f32
    %12 = vector.broadcast %cst_9 : f32 to vector<64x160xf32>
    %13 = arith.maximumf %11, %12 : vector<64x160xf32>
    %c0_10 = arith.constant 0 : index
    %c1 = arith.constant 1 : index
    %c0_11 = arith.constant 0 : index
    %c0_12 = arith.constant 0 : index
    %14 = vector.load %arg0[%c0_10, %c1, %c0_11, %c0_12] : memref<2x4x9x160xf32, #tpu.memory_space<vmem>>, vector<1x1x9x160xf32>
    %15 = vector.shape_cast %14 : vector<1x1x9x160xf32> to vector<9x160xf32>
    %cst_13 = arith.constant dense<0.000000e+00> : vector<64x160xf32>
    %16 = tpu.matmul %0, %15, %cst_13 {dimension_numbers = #tpu.dot_dimension_numbers<[1], [0], [0], [1], [0, 0, 1, 1], [], []>} : vector<64x9xf32>, vector<9x160xf32>, vector<64x160xf32> -> vector<64x160xf32>
    %17 = arith.mulf %16, %3 : vector<64x160xf32>
    %18 = arith.addf %17, %6 : vector<64x160xf32>
    %cst_14 = arith.constant 0.000000e+00 : f32
    %19 = vector.broadcast %cst_14 : f32 to vector<64x160xf32>
    %20 = arith.maximumf %18, %19 : vector<64x160xf32>
    %21 = arith.maximumf %13, %20 : vector<64x160xf32>
    %c0_15 = arith.constant 0 : index
    %c2 = arith.constant 2 : index
    %c0_16 = arith.constant 0 : index
    %c0_17 = arith.constant 0 : index
    %22 = vector.load %arg0[%c0_15, %c2, %c0_16, %c0_17] : memref<2x4x9x160xf32, #tpu.memory_space<vmem>>, vector<1x1x9x160xf32>
    %23 = vector.shape_cast %22 : vector<1x1x9x160xf32> to vector<9x160xf32>
    %cst_18 = arith.constant dense<0.000000e+00> : vector<64x160xf32>
    %24 = tpu.matmul %0, %23, %cst_18 {dimension_numbers = #tpu.dot_dimension_numbers<[1], [0], [0], [1], [0, 0, 1, 1], [], []>} : vector<64x9xf32>, vector<9x160xf32>, vector<64x160xf32> -> vector<64x160xf32>
    %25 = arith.mulf %24, %3 : vector<64x160xf32>
    %26 = arith.addf %25, %6 : vector<64x160xf32>
    %cst_19 = arith.constant 0.000000e+00 : f32
    %27 = vector.broadcast %cst_19 : f32 to vector<64x160xf32>
    %28 = arith.maximumf %26, %27 : vector<64x160xf32>
    %29 = arith.maximumf %21, %28 : vector<64x160xf32>
    %c0_20 = arith.constant 0 : index
    %c3 = arith.constant 3 : index
    %c0_21 = arith.constant 0 : index
    %c0_22 = arith.constant 0 : index
    %30 = vector.load %arg0[%c0_20, %c3, %c0_21, %c0_22] : memref<2x4x9x160xf32, #tpu.memory_space<vmem>>, vector<1x1x9x160xf32>
    %31 = vector.shape_cast %30 : vector<1x1x9x160xf32> to vector<9x160xf32>
    %cst_23 = arith.constant dense<0.000000e+00> : vector<64x160xf32>
    %32 = tpu.matmul %0, %31, %cst_23 {dimension_numbers = #tpu.dot_dimension_numbers<[1], [0], [0], [1], [0, 0, 1, 1], [], []>} : vector<64x9xf32>, vector<9x160xf32>, vector<64x160xf32> -> vector<64x160xf32>
    %33 = arith.mulf %32, %3 : vector<64x160xf32>
    %34 = arith.addf %33, %6 : vector<64x160xf32>
    %cst_24 = arith.constant 0.000000e+00 : f32
    %35 = vector.broadcast %cst_24 : f32 to vector<64x160xf32>
    %36 = arith.maximumf %34, %35 : vector<64x160xf32>
    %37 = arith.maximumf %29, %36 : vector<64x160xf32>
    %c0_25 = arith.constant 0 : index
    %c0_26 = arith.constant 0 : index
    %c0_27 = arith.constant 0 : index
    %38 = vector.load %arg4[%c0_25, %c0_26, %c0_27] : memref<2x64x160xf32, #tpu.memory_space<vmem>>, vector<1x64x160xf32>
    %39 = vector.shape_cast %38 : vector<1x64x160xf32> to vector<64x160xf32>
    %40 = vector.shape_cast %37 : vector<64x160xf32> to vector<1x64x160xf32>
    tpu.vector_store %arg4[%c0_25, %c0_26, %c0_27], %40 {strides = array<i32>} : memref<2x64x160xf32, #tpu.memory_space<vmem>>, vector<1x64x160xf32>,
    %c1_28 = arith.constant 1 : index
    %c0_29 = arith.constant 0 : index
    %c0_30 = arith.constant 0 : index
    %c0_31 = arith.constant 0 : index
    %41 = vector.load %arg0[%c1_28, %c0_29, %c0_30, %c0_31] : memref<2x4x9x160xf32, #tpu.memory_space<vmem>>, vector<1x1x9x160xf32>
    %42 = vector.shape_cast %41 : vector<1x1x9x160xf32> to vector<9x160xf32>
    %cst_32 = arith.constant dense<0.000000e+00> : vector<64x160xf32>
    %43 = tpu.matmul %0, %42, %cst_32 {dimension_numbers = #tpu.dot_dimension_numbers<[1], [0], [0], [1], [0, 0, 1, 1], [], []>} : vector<64x9xf32>, vector<9x160xf32>, vector<64x160xf32> -> vector<64x160xf32>
    %44 = arith.mulf %43, %3 : vector<64x160xf32>
    %45 = arith.addf %44, %6 : vector<64x160xf32>
    %cst_33 = arith.constant 0.000000e+00 : f32
    %46 = vector.broadcast %cst_33 : f32 to vector<64x160xf32>
    %47 = arith.maximumf %45, %46 : vector<64x160xf32>
    %c1_34 = arith.constant 1 : index
    %c1_35 = arith.constant 1 : index
    %c0_36 = arith.constant 0 : index
    %c0_37 = arith.constant 0 : index
    %48 = vector.load %arg0[%c1_34, %c1_35, %c0_36, %c0_37] : memref<2x4x9x160xf32, #tpu.memory_space<vmem>>, vector<1x1x9x160xf32>
    %49 = vector.shape_cast %48 : vector<1x1x9x160xf32> to vector<9x160xf32>
    %cst_38 = arith.constant dense<0.000000e+00> : vector<64x160xf32>
    %50 = tpu.matmul %0, %49, %cst_38 {dimension_numbers = #tpu.dot_dimension_numbers<[1], [0], [0], [1], [0, 0, 1, 1], [], []>} : vector<64x9xf32>, vector<9x160xf32>, vector<64x160xf32> -> vector<64x160xf32>
    %51 = arith.mulf %50, %3 : vector<64x160xf32>
    %52 = arith.addf %51, %6 : vector<64x160xf32>
    %cst_39 = arith.constant 0.000000e+00 : f32
    %53 = vector.broadcast %cst_39 : f32 to vector<64x160xf32>
    %54 = arith.maximumf %52, %53 : vector<64x160xf32>
    %55 = arith.maximumf %47, %54 : vector<64x160xf32>
    %c1_40 = arith.constant 1 : index
    %c2_41 = arith.constant 2 : index
    %c0_42 = arith.constant 0 : index
    %c0_43 = arith.constant 0 : index
    %56 = vector.load %arg0[%c1_40, %c2_41, %c0_42, %c0_43] : memref<2x4x9x160xf32, #tpu.memory_space<vmem>>, vector<1x1x9x160xf32>
    %57 = vector.shape_cast %56 : vector<1x1x9x160xf32> to vector<9x160xf32>
    %cst_44 = arith.constant dense<0.000000e+00> : vector<64x160xf32>
    %58 = tpu.matmul %0, %57, %cst_44 {dimension_numbers = #tpu.dot_dimension_numbers<[1], [0], [0], [1], [0, 0, 1, 1], [], []>} : vector<64x9xf32>, vector<9x160xf32>, vector<64x160xf32> -> vector<64x160xf32>
    %59 = arith.mulf %58, %3 : vector<64x160xf32>
    %60 = arith.addf %59, %6 : vector<64x160xf32>
    %cst_45 = arith.constant 0.000000e+00 : f32
    %61 = vector.broadcast %cst_45 : f32 to vector<64x160xf32>
    %62 = arith.maximumf %60, %61 : vector<64x160xf32>
    %63 = arith.maximumf %55, %62 : vector<64x160xf32>
    %c1_46 = arith.constant 1 : index
    %c3_47 = arith.constant 3 : index
    %c0_48 = arith.constant 0 : index
    %c0_49 = arith.constant 0 : index
    %64 = vector.load %arg0[%c1_46, %c3_47, %c0_48, %c0_49] : memref<2x4x9x160xf32, #tpu.memory_space<vmem>>, vector<1x1x9x160xf32>
    %65 = vector.shape_cast %64 : vector<1x1x9x160xf32> to vector<9x160xf32>
    %cst_50 = arith.constant dense<0.000000e+00> : vector<64x160xf32>
    %66 = tpu.matmul %0, %65, %cst_50 {dimension_numbers = #tpu.dot_dimension_numbers<[1], [0], [0], [1], [0, 0, 1, 1], [], []>} : vector<64x9xf32>, vector<9x160xf32>, vector<64x160xf32> -> vector<64x160xf32>
    %67 = arith.mulf %66, %3 : vector<64x160xf32>
    %68 = arith.addf %67, %6 : vector<64x160xf32>
    %cst_51 = arith.constant 0.000000e+00 : f32
    %69 = vector.broadcast %cst_51 : f32 to vector<64x160xf32>
    %70 = arith.maximumf %68, %69 : vector<64x160xf32>
    %71 = arith.maximumf %63, %70 : vector<64x160xf32>
    %c1_52 = arith.constant 1 : index
    %c0_53 = arith.constant 0 : index
    %c0_54 = arith.constant 0 : index
    %72 = vector.load %arg4[%c1_52, %c0_53, %c0_54] : memref<2x64x160xf32, #tpu.memory_space<vmem>>, vector<1x64x160xf32>
    %73 = vector.shape_cast %72 : vector<1x64x160xf32> to vector<64x160xf32>
    %74 = vector.shape_cast %71 : vector<64x160xf32> to vector<1x64x160xf32>
    tpu.vector_store %arg4[%c1_52, %c0_53, %c0_54], %74 {strides = array<i32>} : memref<2x64x160xf32, #tpu.memory_space<vmem>>, vector<1x64x160xf32>,
    return
  }
}

</mosaic_0001>

<llo_original>
// kernel: tpu_custom_call.1
$region0: #{tpu_custom_call.1}
  #allocation0 [shape = 'u32[]', space=smem, size = 0x4, offset = 0x4, fixed_abs, tag = 'smem constant byte address 0x4 - core index']
  #allocation1 [shape = 'u32[144,128]{1,0:T(1,128)}', space=vmem, size = 0x12000, scoped, tag = 'internal scratch']
  %s0 = inlined_call_operand.vmem [shape: f32[2,4,9,160], index: 0, kind: input, shape index: {}]
  %s1 = inlined_call_operand.vmem [shape: f32[64,9], index: 1, kind: input, shape index: {}]
  %s2 = inlined_call_operand.vmem [shape: f32[64,1], index: 2, kind: input, shape index: {}]
  %s3 = inlined_call_operand.vmem [shape: f32[64,1], index: 3, kind: input, shape index: {}]
  %s4 = inlined_call_operand.hbm [shape: f32[2,64,160], index: 4, kind: output, shape index: {}]
  %s5 = sld [smem:[#allocation0]]
  $region26: #{tpu_custom_call.1} parent=0
    _
  %s7 = ssub.s32 1, %s5
  %s8 = scalar_select 0, %s7, %s5
  $region1: #{tpu_custom_call.1} parent=0
    #allocation2 [shape = 'u8[131072]{0}', space=vmem, size = 0x20000, scoped, tag = 'output window, operand 0, single buffered']
    #allocation3 [shape = 's32[1]{0}', space=sflag, size = 0x4, scoped, tag = 'scoped memory for tpu_custom_call.1']
    %9 = vsyncpa [#allocation3], 0
    // Predicated region
    $region2: #{tpu_custom_call.1} parent=1 // pred_check
      _
    $region3: #{tpu_custom_call.1} parent=1 // pred_check_branch
      %11 = sbr.rel (0) target = $region5
    $region4: #{tpu_custom_call.1} parent=1 // pred_region
      _
    $region5: #{tpu_custom_call.1} parent=1 // pred_fallthru
      _
    // Predicated region
    $region6: #{tpu_custom_call.1} parent=1 // pred_check
      _
    $region7: #{tpu_custom_call.1} parent=1 // pred_check_branch
      %13 = sbr.rel (0) target = $region9
    $region8: #{tpu_custom_call.1} parent=1 // pred_region
      _
    $region9: #{tpu_custom_call.1} parent=1 // pred_fallthru
      _
    // Predicated region
    $region10: #{tpu_custom_call.1} parent=1 // pred_check
      _
    $region11: #{tpu_custom_call.1} parent=1 // pred_check_branch
      %15 = sbr.rel (0) target = $region13
    $region12: #{tpu_custom_call.1} parent=1 // pred_region
      _
    $region13: #{tpu_custom_call.1} parent=1 // pred_fallthru
      _
    // Predicated region
    $region14: #{tpu_custom_call.1} parent=1 // pred_check
      _
    $region15: #{tpu_custom_call.1} parent=1 // pred_check_branch
      %17 = sbr.rel (0) target = $region17
    $region16: #{tpu_custom_call.1} parent=1 // pred_region
      _
    $region17: #{tpu_custom_call.1} parent=1 // pred_fallthru
      _
    %v18 = vld [vmem:[%s1] sm:$0xff]
    %v19 = vld [vmem:[%s1 + $0x8] sm:$0xff]
    %v20 = vld [vmem:[%s1 + $0x10] sm:$0xff]
    %v21 = vld [vmem:[%s1 + $0x18] sm:$0xff]
    %v22 = vld [vmem:[%s1 + $0x20] sm:$0xff]
    %v23 = vld [vmem:[%s1 + $0x28] sm:$0xff]
    %v24 = vld [vmem:[%s1 + $0x30] sm:$0xff]
    %v25 = vld [vmem:[%s1 + $0x38] sm:$0xff]
    %v26 = vld [vmem:[%s2] sm:$0xff]
    %v27 = vld [vmem:[%s2 + $0x8] sm:$0xff]
    %v28 = vld [vmem:[%s2 + $0x10] sm:$0xff]
    %v29 = vld [vmem:[%s2 + $0x18] sm:$0xff]
    %v30 = vld [vmem:[%s2 + $0x20] sm:$0xff]
    %v31 = vld [vmem:[%s2 + $0x28] sm:$0xff]
    %v32 = vld [vmem:[%s2 + $0x30] sm:$0xff]
    %v33 = vld [vmem:[%s2 + $0x38] sm:$0xff]
    %35 = vset.pattern.permute.xlu0 0
    %36 = vperm.xlu0 %35, %v26
    %v37 = vpop.permute.xlu0 %36
    %40 = vset.pattern.permute.xlu0 0
    %41 = vperm.xlu0 %40, %v27
    %v42 = vpop.permute.xlu0 %41
    %45 = vset.pattern.permute.xlu0 0
    %46 = vperm.xlu0 %45, %v28
    %v47 = vpop.permute.xlu0 %46
    %50 = vset.pattern.permute.xlu0 0
    %51 = vperm.xlu0 %50, %v29
    %v52 = vpop.permute.xlu0 %51
    %55 = vset.pattern.permute.xlu0 0
    %56 = vperm.xlu0 %55, %v30
    %v57 = vpop.permute.xlu0 %56
    %60 = vset.pattern.permute.xlu0 0
    %61 = vperm.xlu0 %60, %v31
    %v62 = vpop.permute.xlu0 %61
    %65 = vset.pattern.permute.xlu0 0
    %66 = vperm.xlu0 %65, %v32
    %v67 = vpop.permute.xlu0 %66
    %70 = vset.pattern.permute.xlu0 0
    %71 = vperm.xlu0 %70, %v33
    %v72 = vpop.permute.xlu0 %71
    %v74 = vld [vmem:[%s3] sm:$0xff]
    %v75 = vld [vmem:[%s3 + $0x8] sm:$0xff]
    %v76 = vld [vmem:[%s3 + $0x10] sm:$0xff]
    %v77 = vld [vmem:[%s3 + $0x18] sm:$0xff]
    %v78 = vld [vmem:[%s3 + $0x20] sm:$0xff]
    %v79 = vld [vmem:[%s3 + $0x28] sm:$0xff]
    %v80 = vld [vmem:[%s3 + $0x30] sm:$0xff]
    %v81 = vld [vmem:[%s3 + $0x38] sm:$0xff]
    %83 = vset.pattern.permute.xlu0 0
    %84 = vperm.xlu0 %83, %v74
    %v85 = vpop.permute.xlu0 %84
    %88 = vset.pattern.permute.xlu0 0
    %89 = vperm.xlu0 %88, %v75
    %v90 = vpop.permute.xlu0 %89
    %93 = vset.pattern.permute.xlu0 0
    %94 = vperm.xlu0 %93, %v76
    %v95 = vpop.permute.xlu0 %94
    %98 = vset.pattern.permute.xlu0 0
    %99 = vperm.xlu0 %98, %v77
    %v100 = vpop.permute.xlu0 %99
    %103 = vset.pattern.permute.xlu0 0
    %104 = vperm.xlu0 %103, %v78
    %v105 = vpop.permute.xlu0 %104
    %108 = vset.pattern.permute.xlu0 0
    %109 = vperm.xlu0 %108, %v79
    %v110 = vpop.permute.xlu0 %109
    %113 = vset.pattern.permute.xlu0 0
    %114 = vperm.xlu0 %113, %v80
    %v115 = vpop.permute.xlu0 %114
    %118 = vset.pattern.permute.xlu0 0
    %119 = vperm.xlu0 %118, %v81
    %v120 = vpop.permute.xlu0 %119
    %v122 = vld [vmem:[%s0] sm:$0xff]
    %v123 = vld [vmem:[%s0 + $0x8] sm:$0xff]
    %v124 = vld [vmem:[%s0 + $0x10] sm:$0x1]
    %v125 = vld [vmem:[%s0 + $0x18] sm:$0x1]
    %vm126 = vcmask 72704
    %v128 = vsel %vm126, %v18, 0
    %v131 = vsel %vm126, %v19, 0
    %v134 = vsel %vm126, %v20, 0
    %v137 = vsel %vm126, %v21, 0
    %v140 = vsel %vm126, %v22, 0
    %v143 = vsel %vm126, %v23, 0
    %v146 = vsel %vm126, %v24, 0
    %v149 = vsel %vm126, %v25, 0
    %vm151 = vcmask 1040384
    %v153 = vsel %vm151, %v124, 0
    %v156 = vsel %vm151, %v125, 0
    %158 = vmatprep.subr.mxu0 0.0
    %159 = vmatpush1.msra.mxu0 0.0
    %160 = vmatprep.subr.mxu0 0.0
    %161 = vmatpush1.msra.mxu0 0.0
    %162 = vmatprep.subr.mxu0 0.0
    %163 = vmatpush1.msra.mxu0 0.0
    %164 = vmatprep.subr.mxu0 0.0
    %165 = vmatpush1.msra.mxu0 0.0
    %166 = vmatprep.subr.mxu0 0.0
    %167 = vmatpush1.msra.mxu0 0.0
    %168 = vmatprep.subr.mxu0 0.0
    %169 = vmatpush1.msra.mxu0 0.0
    %170 = vmatprep.subr.mxu0 0.0
    %171 = vmatpush1.msra.mxu0 0.0
    %172 = vmatprep.subr.mxu0 0.0
    %173 = vmatpush1.msra.mxu0 0.0
    %174 = vmatprep.subr.mxu0 0.0
    %175 = vmatpush1.msra.mxu0 0.0
    %176 = vmatprep.subr.mxu0 0.0
    %177 = vmatpush1.msra.mxu0 0.0
    %178 = vmatprep.subr.mxu0 0.0
    %179 = vmatpush1.msra.mxu0 0.0
    %180 = vmatprep.subr.mxu0 0.0
    %181 = vmatpush1.msra.mxu0 0.0
    %182 = vmatprep.subr.mxu0 0.0
    %183 = vmatpush1.msra.mxu0 0.0
    %184 = vmatprep.subr.mxu0 0.0
    %185 = vmatpush1.msra.mxu0 0.0
    %186 = vmatprep.subr.mxu0 %v156
    %187 = vmatpush1.msra.mxu0 %v153
    %188 = vmatprep.subr.mxu0 %v123
    %189 = vmatpush1.msra.mxu0 %v122
    %190 = vmatprep.subr.mxu0 0.0
    %191 = vmatpush2.msra.mxu0 0.0
    %192 = vmatprep.subr.mxu0 0.0
    %193 = vmatpush2.msra.mxu0 0.0
    %194 = vmatprep.subr.mxu0 0.0
    %195 = vmatpush2.msra.mxu0 0.0
    %196 = vmatprep.subr.mxu0 0.0
    %197 = vmatpush2.msra.mxu0 0.0
    %198 = vmatprep.subr.mxu0 0.0
    %199 = vmatpush2.msra.mxu0 0.0
    %200 = vmatprep.subr.mxu0 0.0
    %201 = vmatpush2.msra.mxu0 0.0
    %202 = vmatprep.subr.mxu0 0.0
    %203 = vmatpush2.msra.mxu0 0.0
    %204 = vmatprep.subr.mxu0 0.0
    %205 = vmatpush2.msra.mxu0 0.0
    %206 = vmatprep.subr.mxu0 0.0
    %207 = vmatpush2.msra.mxu0 0.0
    %208 = vmatprep.subr.mxu0 0.0
    %209 = vmatpush2.msra.mxu0 0.0
    %210 = vmatprep.subr.mxu0 0.0
    %211 = vmatpush2.msra.mxu0 0.0
    %212 = vmatprep.subr.mxu0 0.0
    %213 = vmatpush2.msra.mxu0 0.0
    %214 = vmatprep.subr.mxu0 0.0
    %215 = vmatpush2.msra.mxu0 0.0
    %216 = vmatprep.subr.mxu0 0.0
    %217 = vmatpush2.msra.mxu0 0.0
    %218 = vmatprep.subr.mxu0 0.0
    %219 = vmatpush2.msra.mxu0 0.0
    %220 = vmatprep.subr.mxu0 0.0
    %221 = vmatpush2.msra.mxu0 0.0
    %222 = vmatprep.mubr.f32.mxu0 0.0
    %223 = vmatmul.mubr.f32.gmra.mxu0 %v128
    %v224 = vpop.f32.mrf.mxu0
    %v225 = vadd.f32 0.0, %v224
    %v226 = vpop.f32.mrf.mxu0
    %v227 = vadd.f32 0.0, %v226
    %228 = vmatprep.mubr.f32.mxu0 0.0
    %229 = vmatmul.mubr.f32.gmra.mxu0 %v131
    %v230 = vpop.f32.mrf.mxu0
    %v231 = vadd.f32 0.0, %v230
    %v232 = vpop.f32.mrf.mxu0
    %v233 = vadd.f32 0.0, %v232
    %234 = vmatprep.mubr.f32.mxu0 0.0
    %235 = vmatmul.mubr.f32.gmra.mxu0 %v134
    %v236 = vpop.f32.mrf.mxu0
    %v237 = vadd.f32 0.0, %v236
    %v238 = vpop.f32.mrf.mxu0
    %v239 = vadd.f32 0.0, %v238
    %240 = vmatprep.mubr.f32.mxu0 0.0
    %241 = vmatmul.mubr.f32.gmra.mxu0 %v137
    %v242 = vpop.f32.mrf.mxu0
    %v243 = vadd.f32 0.0, %v242
    %v244 = vpop.f32.mrf.mxu0
    %v245 = vadd.f32 0.0, %v244
    %246 = vmatprep.mubr.f32.mxu0 0.0
    %247 = vmatmul.mubr.f32.gmra.mxu0 %v140
    %v248 = vpop.f32.mrf.mxu0
    %v249 = vadd.f32 0.0, %v248
    %v250 = vpop.f32.mrf.mxu0
    %v251 = vadd.f32 0.0, %v250
    %252 = vmatprep.mubr.f32.mxu0 0.0
    %253 = vmatmul.mubr.f32.gmra.mxu0 %v143
    %v254 = vpop.f32.mrf.mxu0
    %v255 = vadd.f32 0.0, %v254
    %v256 = vpop.f32.mrf.mxu0
    %v257 = vadd.f32 0.0, %v256
    %258 = vmatprep.mubr.f32.mxu0 0.0
    %259 = vmatmul.mubr.f32.gmra.mxu0 %v146
    %v260 = vpop.f32.mrf.mxu0
    %v261 = vadd.f32 0.0, %v260
    %v262 = vpop.f32.mrf.mxu0
    %v263 = vadd.f32 0.0, %v262
    %264 = vmatprep.mubr.f32.mxu0 0.0
    %265 = vmatmul.mubr.f32.gmra.mxu0 %v149
    %v266 = vpop.f32.mrf.mxu0
    %v267 = vadd.f32 0.0, %v266
    %v268 = vpop.f32.mrf.mxu0
    %v269 = vadd.f32 0.0, %v268
    %270 = vdwg.mxu0
    %v271 = vmul.f32 %v225, %v37
    %v272 = vmul.f32 %v227, %v37
    %v273 = vmul.f32 %v231, %v42
    %v274 = vmul.f32 %v233, %v42
    %v275 = vmul.f32 %v237, %v47
    %v276 = vmul.f32 %v239, %v47
    %v277 = vmul.f32 %v243, %v52
    %v278 = vmul.f32 %v245, %v52
    %v279 = vmul.f32 %v249, %v57
    %v280 = vmul.f32 %v251, %v57
    %v281 = vmul.f32 %v255, %v62
    %v282 = vmul.f32 %v257, %v62
    %v283 = vmul.f32 %v261, %v67
    %v284 = vmul.f32 %v263, %v67
    %v285 = vmul.f32 %v267, %v72
    %v286 = vmul.f32 %v269, %v72
    %v287 = vadd.f32 %v271, %v85
    %v288 = vadd.f32 %v272, %v85
    %v289 = vadd.f32 %v273, %v90
    %v290 = vadd.f32 %v274, %v90
    %v291 = vadd.f32 %v275, %v95
    %v292 = vadd.f32 %v276, %v95
    %v293 = vadd.f32 %v277, %v100
    %v294 = vadd.f32 %v278, %v100
    %v295 = vadd.f32 %v279, %v105
    %v296 = vadd.f32 %v280, %v105
    %v297 = vadd.f32 %v281, %v110
    %v298 = vadd.f32 %v282, %v110
    %v299 = vadd.f32 %v283, %v115
    %v300 = vadd.f32 %v284, %v115
    %v301 = vadd.f32 %v285, %v120
    %v302 = vadd.f32 %v286, %v120
    %v303 = vmax.f32 %v287, 0.0
    %v304 = vmax.f32 %v288, 0.0
    %v305 = vmax.f32 %v289, 0.0
    %v306 = vmax.f32 %v290, 0.0
    %v307 = vmax.f32 %v291, 0.0
    %v308 = vmax.f32 %v292, 0.0
    %v309 = vmax.f32 %v293, 0.0
    %v310 = vmax.f32 %v294, 0.0
    %v311 = vmax.f32 %v295, 0.0
    %v312 = vmax.f32 %v296, 0.0
    %v313 = vmax.f32 %v297, 0.0
    %v314 = vmax.f32 %v298, 0.0
    %v315 = vmax.f32 %v299, 0.0
    %v316 = vmax.f32 %v300, 0.0
    %v317 = vmax.f32 %v301, 0.0
    %v318 = vmax.f32 %v302, 0.0
    %s319 = scalar_lea.vmem %s0, 32
    %v320 = vld [vmem:[%s319] sm:$0xff]
    %v321 = vld [vmem:[%s319 + $0x8] sm:$0xff]
    %v322 = vld [vmem:[%s319 + $0x10] sm:$0x1]
    %v323 = vld [vmem:[%s319 + $0x18] sm:$0x1]
    %v325 = vsel %vm151, %v322, 0
    %v328 = vsel %vm151, %v323, 0
    %330 = vmatprep.subr.mxu0 0.0
    %331 = vmatpush1.msra.mxu0 0.0
    %332 = vmatprep.subr.mxu0 0.0
    %333 = vmatpush1.msra.mxu0 0.0
    %334 = vmatprep.subr.mxu0 0.0
    %335 = vmatpush1.msra.mxu0 0.0
    %336 = vmatprep.subr.mxu0 0.0
    %337 = vmatpush1.msra.mxu0 0.0
    %338 = vmatprep.subr.mxu0 0.0
    %339 = vmatpush1.msra.mxu0 0.0
    %340 = vmatprep.subr.mxu0 0.0
    %341 = vmatpush1.msra.mxu0 0.0
    %342 = vmatprep.subr.mxu0 0.0
    %343 = vmatpush1.msra.mxu0 0.0
    %344 = vmatprep.subr.mxu0 0.0
    %345 = vmatpush1.msra.mxu0 0.0
    %346 = vmatprep.subr.mxu0 0.0
    %347 = vmatpush1.msra.mxu0 0.0
    %348 = vmatprep.subr.mxu0 0.0
    %349 = vmatpush1.msra.mxu0 0.0
    %350 = vmatprep.subr.mxu0 0.0
    %351 = vmatpush1.msra.mxu0 0.0
    %352 = vmatprep.subr.mxu0 0.0
    %353 = vmatpush1.msra.mxu0 0.0
    %354 = vmatprep.subr.mxu0 0.0
    %355 = vmatpush1.msra.mxu0 0.0
    %356 = vmatprep.subr.mxu0 0.0
    %357 = vmatpush1.msra.mxu0 0.0
    %358 = vmatprep.subr.mxu0 %v328
    %359 = vmatpush1.msra.mxu0 %v325
    %360 = vmatprep.subr.mxu0 %v321
    %361 = vmatpush1.msra.mxu0 %v320
    %362 = vmatprep.subr.mxu0 0.0
    %363 = vmatpush2.msra.mxu0 0.0
    %364 = vmatprep.subr.mxu0 0.0
    %365 = vmatpush2.msra.mxu0 0.0
    %366 = vmatprep.subr.mxu0 0.0
    %367 = vmatpush2.msra.mxu0 0.0
    %368 = vmatprep.subr.mxu0 0.0
    %369 = vmatpush2.msra.mxu0 0.0
    %370 = vmatprep.subr.mxu0 0.0
    %371 = vmatpush2.msra.mxu0 0.0
    %372 = vmatprep.subr.mxu0 0.0
    %373 = vmatpush2.msra.mxu0 0.0
    %374 = vmatprep.subr.mxu0 0.0
    %375 = vmatpush2.msra.mxu0 0.0
    %376 = vmatprep.subr.mxu0 0.0
    %377 = vmatpush2.msra.mxu0 0.0
    %378 = vmatprep.subr.mxu0 0.0
    %379 = vmatpush2.msra.mxu0 0.0
    %380 = vmatprep.subr.mxu0 0.0
    %381 = vmatpush2.msra.mxu0 0.0
    %382 = vmatprep.subr.mxu0 0.0
    %383 = vmatpush2.msra.mxu0 0.0
    %384 = vmatprep.subr.mxu0 0.0
    %385 = vmatpush2.msra.mxu0 0.0
    %386 = vmatprep.subr.mxu0 0.0
    %387 = vmatpush2.msra.mxu0 0.0
    %388 = vmatprep.subr.mxu0 0.0
    %389 = vmatpush2.msra.mxu0 0.0
    %390 = vmatprep.subr.mxu0 0.0
    %391 = vmatpush2.msra.mxu0 0.0
    %392 = vmatprep.subr.mxu0 0.0
    %393 = vmatpush2.msra.mxu0 0.0
    %394 = vmatprep.mubr.f32.mxu0 0.0
    %395 = vmatmul.mubr.f32.gmra.mxu0 %v128
    %v396 = vpop.f32.mrf.mxu0
    %v397 = vadd.f32 0.0, %v396
    %v398 = vpop.f32.mrf.mxu0
    %v399 = vadd.f32 0.0, %v398
    %400 = vmatprep.mubr.f32.mxu0 0.0
    %401 = vmatmul.mubr.f32.gmra.mxu0 %v131
    %v402 = vpop.f32.mrf.mxu0
    %v403 = vadd.f32 0.0, %v402
    %v404 = vpop.f32.mrf.mxu0
    %v405 = vadd.f32 0.0, %v404
    %406 = vmatprep.mubr.f32.mxu0 0.0
    %407 = vmatmul.mubr.f32.gmra.mxu0 %v134
    %v408 = vpop.f32.mrf.mxu0
    %v409 = vadd.f32 0.0, %v408
    %v410 = vpop.f32.mrf.mxu0
    %v411 = vadd.f32 0.0, %v410
    %412 = vmatprep.mubr.f32.mxu0 0.0
    %413 = vmatmul.mubr.f32.gmra.mxu0 %v137
    %v414 = vpop.f32.mrf.mxu0
    %v415 = vadd.f32 0.0, %v414
    %v416 = vpop.f32.mrf.mxu0
    %v417 = vadd.f32 0.0, %v416
    %418 = vmatprep.mubr.f32.mxu0 0.0
    %419 = vmatmul.mubr.f32.gmra.mxu0 %v140
    %v420 = vpop.f32.mrf.mxu0
    %v421 = vadd.f32 0.0, %v420
    %v422 = vpop.f32.mrf.mxu0
    %v423 = vadd.f32 0.0, %v422
    %424 = vmatprep.mubr.f32.mxu0 0.0
    %425 = vmatmul.mubr.f32.gmra.mxu0 %v143
    %v426 = vpop.f32.mrf.mxu0
    %v427 = vadd.f32 0.0, %v426
    %v428 = vpop.f32.mrf.mxu0
    %v429 = vadd.f32 0.0, %v428
    %430 = vmatprep.mubr.f32.mxu0 0.0
    %431 = vmatmul.mubr.f32.gmra.mxu0 %v146
    %v432 = vpop.f32.mrf.mxu0
    %v433 = vadd.f32 0.0, %v432
    %v434 = vpop.f32.mrf.mxu0
    %v435 = vadd.f32 0.0, %v434
    %436 = vmatprep.mubr.f32.mxu0 0.0
    %437 = vmatmul.mubr.f32.gmra.mxu0 %v149
    %v438 = vpop.f32.mrf.mxu0
    %v439 = vadd.f32 0.0, %v438
    %v440 = vpop.f32.mrf.mxu0
    %v441 = vadd.f32 0.0, %v440
    %442 = vdwg.mxu0
    %v443 = vmul.f32 %v397, %v37
    %v444 = vmul.f32 %v399, %v37
    %v445 = vmul.f32 %v403, %v42
    %v446 = vmul.f32 %v405, %v42
    %v447 = vmul.f32 %v409, %v47
    %v448 = vmul.f32 %v411, %v47
    %v449 = vmul.f32 %v415, %v52
    %v450 = vmul.f32 %v417, %v52
    %v451 = vmul.f32 %v421, %v57
    %v452 = vmul.f32 %v423, %v57
    %v453 = vmul.f32 %v427, %v62
    %v454 = vmul.f32 %v429, %v62
    %v455 = vmul.f32 %v433, %v67
    %v456 = vmul.f32 %v435, %v67
    %v457 = vmul.f32 %v439, %v72
    %v458 = vmul.f32 %v441, %v72
    %v459 = vadd.f32 %v443, %v85
    %v460 = vadd.f32 %v444, %v85
    %v461 = vadd.f32 %v445, %v90
    %v462 = vadd.f32 %v446, %v90
    %v463 = vadd.f32 %v447, %v95
    %v464 = vadd.f32 %v448, %v95
    %v465 = vadd.f32 %v449, %v100
    %v466 = vadd.f32 %v450, %v100
    %v467 = vadd.f32 %v451, %v105
    %v468 = vadd.f32 %v452, %v105
    %v469 = vadd.f32 %v453, %v110
    %v470 = vadd.f32 %v454, %v110
    %v471 = vadd.f32 %v455, %v115
    %v472 = vadd.f32 %v456, %v115
    %v473 = vadd.f32 %v457, %v120
    %v474 = vadd.f32 %v458, %v120
    %v475 = vmax.f32 %v459, 0.0
    %v476 = vmax.f32 %v460, 0.0
    %v477 = vmax.f32 %v461, 0.0
    %v478 = vmax.f32 %v462, 0.0
    %v479 = vmax.f32 %v463, 0.0
    %v480 = vmax.f32 %v464, 0.0
    %v481 = vmax.f32 %v465, 0.0
    %v482 = vmax.f32 %v466, 0.0
    %v483 = vmax.f32 %v467, 0.0
    %v484 = vmax.f32 %v468, 0.0
    %v485 = vmax.f32 %v469, 0.0
    %v486 = vmax.f32 %v470, 0.0
    %v487 = vmax.f32 %v471, 0.0
    %v488 = vmax.f32 %v472, 0.0
    %v489 = vmax.f32 %v473, 0.0
    %v490 = vmax.f32 %v474, 0.0
    %v491 = vmax.f32 %v303, %v475
    %v492 = vmax.f32 %v304, %v476
    %v493 = vmax.f32 %v305, %v477
    %v494 = vmax.f32 %v306, %v478
    %v495 = vmax.f32 %v307, %v479
    %v496 = vmax.f32 %v308, %v480
    %v497 = vmax.f32 %v309, %v481
    %v498 = vmax.f32 %v310, %v482
    %v499 = vmax.f32 %v311, %v483
    %v500 = vmax.f32 %v312, %v484
    %v501 = vmax.f32 %v313, %v485
    %v502 = vmax.f32 %v314, %v486
    %v503 = vmax.f32 %v315, %v487
    %v504 = vmax.f32 %v316, %v488
    %v505 = vmax.f32 %v317, %v489
    %v506 = vmax.f32 %v318, %v490
    %s507 = scalar_lea.vmem %s0, 64
    %v508 = vld [vmem:[%s507] sm:$0xff]
    %v509 = vld [vmem:[%s507 + $0x8] sm:$0xff]
    %v510 = vld [vmem:[%s507 + $0x10] sm:$0x1]
    %v511 = vld [vmem:[%s507 + $0x18] sm:$0x1]
    %v513 = vsel %vm151, %v510, 0
    %v516 = vsel %vm151, %v511, 0
    %518 = vmatprep.subr.mxu0 0.0
    %519 = vmatpush1.msra.mxu0 0.0
    %520 = vmatprep.subr.mxu0 0.0
    %521 = vmatpush1.msra.mxu0 0.0
    %522 = vmatprep.subr.mxu0 0.0
    %523 = vmatpush1.msra.mxu0 0.0
    %524 = vmatprep.subr.mxu0 0.0
    %525 = vmatpush1.msra.mxu0 0.0
    %526 = vmatprep.subr.mxu0 0.0
    %527 = vmatpush1.msra.mxu0 0.0
    %528 = vmatprep.subr.mxu0 0.0
    %529 = vmatpush1.msra.mxu0 0.0
    %530 = vmatprep.subr.mxu0 0.0
    %531 = vmatpush1.msra.mxu0 0.0
    %532 = vmatprep.subr.mxu0 0.0
    %533 = vmatpush1.msra.mxu0 0.0
    %534 = vmatprep.subr.mxu0 0.0
    %535 = vmatpush1.msra.mxu0 0.0
    %536 = vmatprep.subr.mxu0 0.0
    %537 = vmatpush1.msra.mxu0 0.0
    %538 = vmatprep.subr.mxu0 0.0
    %539 = vmatpush1.msra.mxu0 0.0
    %540 = vmatprep.subr.mxu0 0.0
    %541 = vmatpush1.msra.mxu0 0.0
    %542 = vmatprep.subr.mxu0 0.0
    %543 = vmatpush1.msra.mxu0 0.0
    %544 = vmatprep.subr.mxu0 0.0
    %545 = vmatpush1.msra.mxu0 0.0
    %546 = vmatprep.subr.mxu0 %v516
    %547 = vmatpush1.msra.mxu0 %v513
    %548 = vmatprep.subr.mxu0 %v509
    %549 = vmatpush1.msra.mxu0 %v508
    %550 = vmatprep.subr.mxu0 0.0
    %551 = vmatpush2.msra.mxu0 0.0
    %552 = vmatprep.subr.mxu0 0.0
    %553 = vmatpush2.msra.mxu0 0.0
    %554 = vmatprep.subr.mxu0 0.0
    %555 = vmatpush2.msra.mxu0 0.0
    %556 = vmatprep.subr.mxu0 0.0
    %557 = vmatpush2.msra.mxu0 0.0
    %558 = vmatprep.subr.mxu0 0.0
    %559 = vmatpush2.msra.mxu0 0.0
    %560 = vmatprep.subr.mxu0 0.0
    %561 = vmatpush2.msra.mxu0 0.0
    %562 = vmatprep.subr.mxu0 0.0
    %563 = vmatpush2.msra.mxu0 0.0
    %564 = vmatprep.subr.mxu0 0.0
    %565 = vmatpush2.msra.mxu0 0.0
    %566 = vmatprep.subr.mxu0 0.0
    %567 = vmatpush2.msra.mxu0 0.0
    %568 = vmatprep.subr.mxu0 0.0
    %569 = vmatpush2.msra.mxu0 0.0
    %570 = vmatprep.subr.mxu0 0.0
    %571 = vmatpush2.msra.mxu0 0.0
    %572 = vmatprep.subr.mxu0 0.0
    %573 = vmatpush2.msra.mxu0 0.0
    %574 = vmatprep.subr.mxu0 0.0
    %575 = vmatpush2.msra.mxu0 0.0
    %576 = vmatprep.subr.mxu0 0.0
    %577 = vmatpush2.msra.mxu0 0.0
    %578 = vmatprep.subr.mxu0 0.0
    %579 = vmatpush2.msra.mxu0 0.0
    %580 = vmatprep.subr.mxu0 0.0
    %581 = vmatpush2.msra.mxu0 0.0
    %582 = vmatprep.mubr.f32.mxu0 0.0
    %583 = vmatmul.mubr.f32.gmra.mxu0 %v128
    %v584 = vpop.f32.mrf.mxu0
    %v585 = vadd.f32 0.0, %v584
    %v586 = vpop.f32.mrf.mxu0
    %v587 = vadd.f32 0.0, %v586
    %588 = vmatprep.mubr.f32.mxu0 0.0
    %589 = vmatmul.mubr.f32.gmra.mxu0 %v131
    %v590 = vpop.f32.mrf.mxu0
    %v591 = vadd.f32 0.0, %v590
    %v592 = vpop.f32.mrf.mxu0
    %v593 = vadd.f32 0.0, %v592
    %594 = vmatprep.mubr.f32.mxu0 0.0
    %595 = vmatmul.mubr.f32.gmra.mxu0 %v134
    %v596 = vpop.f32.mrf.mxu0
    %v597 = vadd.f32 0.0, %v596
    %v598 = vpop.f32.mrf.mxu0
    %v599 = vadd.f32 0.0, %v598
    %600 = vmatprep.mubr.f32.mxu0 0.0
    %601 = vmatmul.mubr.f32.gmra.mxu0 %v137
    %v602 = vpop.f32.mrf.mxu0
    %v603 = vadd.f32 0.0, %v602
    %v604 = vpop.f32.mrf.mxu0
    %v605 = vadd.f32 0.0, %v604
    %606 = vmatprep.mubr.f32.mxu0 0.0
    %607 = vmatmul.mubr.f32.gmra.mxu0 %v140
    %v608 = vpop.f32.mrf.mxu0
    %v609 = vadd.f32 0.0, %v608
    %v610 = vpop.f32.mrf.mxu0
    %v611 = vadd.f32 0.0, %v610
    %612 = vmatprep.mubr.f32.mxu0 0.0
    %613 = vmatmul.mubr.f32.gmra.mxu0 %v143
    %v614 = vpop.f32.mrf.mxu0
    %v615 = vadd.f32 0.0, %v614
    %v616 = vpop.f32.mrf.mxu0
    %v617 = vadd.f32 0.0, %v616
    %618 = vmatprep.mubr.f32.mxu0 0.0
    %619 = vmatmul.mubr.f32.gmra.mxu0 %v146
    %v620 = vpop.f32.mrf.mxu0
    %v621 = vadd.f32 0.0, %v620
    %v622 = vpop.f32.mrf.mxu0
    %v623 = vadd.f32 0.0, %v622
    %624 = vmatprep.mubr.f32.mxu0 0.0
    %625 = vmatmul.mubr.f32.gmra.mxu0 %v149
    %v626 = vpop.f32.mrf.mxu0
    %v627 = vadd.f32 0.0, %v626
    %v628 = vpop.f32.mrf.mxu0
    %v629 = vadd.f32 0.0, %v628
    %630 = vdwg.mxu0
    %v631 = vmul.f32 %v585, %v37
    %v632 = vmul.f32 %v587, %v37
    %v633 = vmul.f32 %v591, %v42
    %v634 = vmul.f32 %v593, %v42
    %v635 = vmul.f32 %v597, %v47
    %v636 = vmul.f32 %v599, %v47
    %v637 = vmul.f32 %v603, %v52
    %v638 = vmul.f32 %v605, %v52
    %v639 = vmul.f32 %v609, %v57
    %v640 = vmul.f32 %v611, %v57
    %v641 = vmul.f32 %v615, %v62
    %v642 = vmul.f32 %v617, %v62
    %v643 = vmul.f32 %v621, %v67
    %v644 = vmul.f32 %v623, %v67
    %v645 = vmul.f32 %v627, %v72
    %v646 = vmul.f32 %v629, %v72
    %v647 = vadd.f32 %v631, %v85
    %v648 = vadd.f32 %v632, %v85
    %v649 = vadd.f32 %v633, %v90
    %v650 = vadd.f32 %v634, %v90
    %v651 = vadd.f32 %v635, %v95
    %v652 = vadd.f32 %v636, %v95
    %v653 = vadd.f32 %v637, %v100
    %v654 = vadd.f32 %v638, %v100
    %v655 = vadd.f32 %v639, %v105
    %v656 = vadd.f32 %v640, %v105
    %v657 = vadd.f32 %v641, %v110
    %v658 = vadd.f32 %v642, %v110
    %v659 = vadd.f32 %v643, %v115
    %v660 = vadd.f32 %v644, %v115
    %v661 = vadd.f32 %v645, %v120
    %v662 = vadd.f32 %v646, %v120
    %v663 = vmax.f32 %v647, 0.0
    %v664 = vmax.f32 %v648, 0.0
    %v665 = vmax.f32 %v649, 0.0
    %v666 = vmax.f32 %v650, 0.0
    %v667 = vmax.f32 %v651, 0.0
    %v668 = vmax.f32 %v652, 0.0
    %v669 = vmax.f32 %v653, 0.0
    %v670 = vmax.f32 %v654, 0.0
    %v671 = vmax.f32 %v655, 0.0
    %v672 = vmax.f32 %v656, 0.0
    %v673 = vmax.f32 %v657, 0.0
    %v674 = vmax.f32 %v658, 0.0
    %v675 = vmax.f32 %v659, 0.0
    %v676 = vmax.f32 %v660, 0.0
    %v677 = vmax.f32 %v661, 0.0
    %v678 = vmax.f32 %v662, 0.0
    %v679 = vmax.f32 %v491, %v663
    %v680 = vmax.f32 %v492, %v664
    %v681 = vmax.f32 %v493, %v665
    %v682 = vmax.f32 %v494, %v666
    %v683 = vmax.f32 %v495, %v667
    %v684 = vmax.f32 %v496, %v668
    %v685 = vmax.f32 %v497, %v669
    %v686 = vmax.f32 %v498, %v670
    %v687 = vmax.f32 %v499, %v671
    %v688 = vmax.f32 %v500, %v672
    %v689 = vmax.f32 %v501, %v673
    %v690 = vmax.f32 %v502, %v674
    %v691 = vmax.f32 %v503, %v675
    %v692 = vmax.f32 %v504, %v676
    %v693 = vmax.f32 %v505, %v677
    %v694 = vmax.f32 %v506, %v678
    %s695 = scalar_lea.vmem %s0, 96
    %v696 = vld [vmem:[%s695] sm:$0xff]
    %v697 = vld [vmem:[%s695 + $0x8] sm:$0xff]
    %v698 = vld [vmem:[%s695 + $0x10] sm:$0x1]
    %v699 = vld [vmem:[%s695 + $0x18] sm:$0x1]
    %v701 = vsel %vm151, %v698, 0
    %v704 = vsel %vm151, %v699, 0
    %706 = vmatprep.subr.mxu0 0.0
    %707 = vmatpush1.msra.mxu0 0.0
    %708 = vmatprep.subr.mxu0 0.0
    %709 = vmatpush1.msra.mxu0 0.0
    %710 = vmatprep.subr.mxu0 0.0
    %711 = vmatpush1.msra.mxu0 0.0
    %712 = vmatprep.subr.mxu0 0.0
    %713 = vmatpush1.msra.mxu0 0.0
    %714 = vmatprep.subr.mxu0 0.0
    %715 = vmatpush1.msra.mxu0 0.0
    %716 = vmatprep.subr.mxu0 0.0
    %717 = vmatpush1.msra.mxu0 0.0
    %718 = vmatprep.subr.mxu0 0.0
    %719 = vmatpush1.msra.mxu0 0.0
    %720 = vmatprep.subr.mxu0 0.0
    %721 = vmatpush1.msra.mxu0 0.0
    %722 = vmatprep.subr.mxu0 0.0
    %723 = vmatpush1.msra.mxu0 0.0
    %724 = vmatprep.subr.mxu0 0.0
    %725 = vmatpush1.msra.mxu0 0.0
    %726 = vmatprep.subr.mxu0 0.0
    %727 = vmatpush1.msra.mxu0 0.0
    %728 = vmatprep.subr.mxu0 0.0
    %729 = vmatpush1.msra.mxu0 0.0
    %730 = vmatprep.subr.mxu0 0.0
    %731 = vmatpush1.msra.mxu0 0.0
    %732 = vmatprep.subr.mxu0 0.0
    %733 = vmatpush1.msra.mxu0 0.0
    %734 = vmatprep.subr.mxu0 %v704
    %735 = vmatpush1.msra.mxu0 %v701
    %736 = vmatprep.subr.mxu0 %v697
    %737 = vmatpush1.msra.mxu0 %v696
    %738 = vmatprep.subr.mxu0 0.0
    %739 = vmatpush2.msra.mxu0 0.0
    %740 = vmatprep.subr.mxu0 0.0
    %741 = vmatpush2.msra.mxu0 0.0
    %742 = vmatprep.subr.mxu0 0.0
    %743 = vmatpush2.msra.mxu0 0.0
    %744 = vmatprep.subr.mxu0 0.0
    %745 = vmatpush2.msra.mxu0 0.0
    %746 = vmatprep.subr.mxu0 0.0
    %747 = vmatpush2.msra.mxu0 0.0
    %748 = vmatprep.subr.mxu0 0.0
    %749 = vmatpush2.msra.mxu0 0.0
    %750 = vmatprep.subr.mxu0 0.0
    %751 = vmatpush2.msra.mxu0 0.0
    %752 = vmatprep.subr.mxu0 0.0
    %753 = vmatpush2.msra.mxu0 0.0
    %754 = vmatprep.subr.mxu0 0.0
    %755 = vmatpush2.msra.mxu0 0.0
    %756 = vmatprep.subr.mxu0 0.0
    %757 = vmatpush2.msra.mxu0 0.0
    %758 = vmatprep.subr.mxu0 0.0
    %759 = vmatpush2.msra.mxu0 0.0
    %760 = vmatprep.subr.mxu0 0.0
    %761 = vmatpush2.msra.mxu0 0.0
    %762 = vmatprep.subr.mxu0 0.0
    %763 = vmatpush2.msra.mxu0 0.0
    %764 = vmatprep.subr.mxu0 0.0
    %765 = vmatpush2.msra.mxu0 0.0
    %766 = vmatprep.subr.mxu0 0.0
    %767 = vmatpush2.msra.mxu0 0.0
    %768 = vmatprep.subr.mxu0 0.0
    %769 = vmatpush2.msra.mxu0 0.0
    %770 = vmatprep.mubr.f32.mxu0 0.0
    %771 = vmatmul.mubr.f32.gmra.mxu0 %v128
    %v772 = vpop.f32.mrf.mxu0
    %v773 = vadd.f32 0.0, %v772
    %v774 = vpop.f32.mrf.mxu0
    %v775 = vadd.f32 0.0, %v774
    %776 = vmatprep.mubr.f32.mxu0 0.0
    %777 = vmatmul.mubr.f32.gmra.mxu0 %v131
    %v778 = vpop.f32.mrf.mxu0
    %v779 = vadd.f32 0.0, %v778
    %v780 = vpop.f32.mrf.mxu0
    %v781 = vadd.f32 0.0, %v780
    %782 = vmatprep.mubr.f32.mxu0 0.0
    %783 = vmatmul.mubr.f32.gmra.mxu0 %v134
    %v784 = vpop.f32.mrf.mxu0
    %v785 = vadd.f32 0.0, %v784
    %v786 = vpop.f32.mrf.mxu0
    %v787 = vadd.f32 0.0, %v786
    %788 = vmatprep.mubr.f32.mxu0 0.0
    %789 = vmatmul.mubr.f32.gmra.mxu0 %v137
    %v790 = vpop.f32.mrf.mxu0
    %v791 = vadd.f32 0.0, %v790
    %v792 = vpop.f32.mrf.mxu0
    %v793 = vadd.f32 0.0, %v792
    %794 = vmatprep.mubr.f32.mxu0 0.0
    %795 = vmatmul.mubr.f32.gmra.mxu0 %v140
    %v796 = vpop.f32.mrf.mxu0
    %v797 = vadd.f32 0.0, %v796
    %v798 = vpop.f32.mrf.mxu0
    %v799 = vadd.f32 0.0, %v798
    %800 = vmatprep.mubr.f32.mxu0 0.0
    %801 = vmatmul.mubr.f32.gmra.mxu0 %v143
    %v802 = vpop.f32.mrf.mxu0
    %v803 = vadd.f32 0.0, %v802
    %v804 = vpop.f32.mrf.mxu0
    %v805 = vadd.f32 0.0, %v804
    %806 = vmatprep.mubr.f32.mxu0 0.0
    %807 = vmatmul.mubr.f32.gmra.mxu0 %v146
    %v808 = vpop.f32.mrf.mxu0
    %v809 = vadd.f32 0.0, %v808
    %v810 = vpop.f32.mrf.mxu0
    %v811 = vadd.f32 0.0, %v810
    %812 = vmatprep.mubr.f32.mxu0 0.0
    %813 = vmatmul.mubr.f32.gmra.mxu0 %v149
    %v814 = vpop.f32.mrf.mxu0
    %v815 = vadd.f32 0.0, %v814
    %v816 = vpop.f32.mrf.mxu0
    %v817 = vadd.f32 0.0, %v816
    %818 = vdwg.mxu0
    %v819 = vmul.f32 %v773, %v37
    %v820 = vmul.f32 %v775, %v37
    %v821 = vmul.f32 %v779, %v42
    %v822 = vmul.f32 %v781, %v42
    %v823 = vmul.f32 %v785, %v47
    %v824 = vmul.f32 %v787, %v47
    %v825 = vmul.f32 %v791, %v52
    %v826 = vmul.f32 %v793, %v52
    %v827 = vmul.f32 %v797, %v57
    %v828 = vmul.f32 %v799, %v57
    %v829 = vmul.f32 %v803, %v62
    %v830 = vmul.f32 %v805, %v62
    %v831 = vmul.f32 %v809, %v67
    %v832 = vmul.f32 %v811, %v67
    %v833 = vmul.f32 %v815, %v72
    %v834 = vmul.f32 %v817, %v72
    %v835 = vadd.f32 %v819, %v85
    %v836 = vadd.f32 %v820, %v85
    %v837 = vadd.f32 %v821, %v90
    %v838 = vadd.f32 %v822, %v90
    %v839 = vadd.f32 %v823, %v95
    %v840 = vadd.f32 %v824, %v95
    %v841 = vadd.f32 %v825, %v100
    %v842 = vadd.f32 %v826, %v100
    %v843 = vadd.f32 %v827, %v105
    %v844 = vadd.f32 %v828, %v105
    %v845 = vadd.f32 %v829, %v110
    %v846 = vadd.f32 %v830, %v110
    %v847 = vadd.f32 %v831, %v115
    %v848 = vadd.f32 %v832, %v115
    %v849 = vadd.f32 %v833, %v120
    %v850 = vadd.f32 %v834, %v120
    %v851 = vmax.f32 %v835, 0.0
    %v852 = vmax.f32 %v836, 0.0
    %v853 = vmax.f32 %v837, 0.0
    %v854 = vmax.f32 %v838, 0.0
    %v855 = vmax.f32 %v839, 0.0
    %v856 = vmax.f32 %v840, 0.0
    %v857 = vmax.f32 %v841, 0.0
    %v858 = vmax.f32 %v842, 0.0
    %v859 = vmax.f32 %v843, 0.0
    %v860 = vmax.f32 %v844, 0.0
    %v861 = vmax.f32 %v845, 0.0
    %v862 = vmax.f32 %v846, 0.0
    %v863 = vmax.f32 %v847, 0.0
    %v864 = vmax.f32 %v848, 0.0
    %v865 = vmax.f32 %v849, 0.0
    %v866 = vmax.f32 %v850, 0.0
    %v867 = vmax.f32 %v679, %v851
    %v868 = vmax.f32 %v680, %v852
    %v869 = vmax.f32 %v681, %v853
    %v870 = vmax.f32 %v682, %v854
    %v871 = vmax.f32 %v683, %v855
    %v872 = vmax.f32 %v684, %v856
    %v873 = vmax.f32 %v685, %v857
    %v874 = vmax.f32 %v686, %v858
    %v875 = vmax.f32 %v687, %v859
    %v876 = vmax.f32 %v688, %v860
    %v877 = vmax.f32 %v689, %v861
    %v878 = vmax.f32 %v690, %v862
    %v879 = vmax.f32 %v691, %v863
    %v880 = vmax.f32 %v692, %v864
    %v881 = vmax.f32 %v693, %v865
    %v882 = vmax.f32 %v694, %v866
    %883 = vst [vmem:[#allocation2] sm:$0xff] %v867
    %vm884 = vcmask 261120
    %885 = vst.msk [vmem:[#allocation2 + $0x8] sm:$0xff] %vm884, %v868
    %886 = vst [vmem:[#allocation2 + $0x10] sm:$0xff] %v869
    %887 = vst.msk [vmem:[#allocation2 + $0x18] sm:$0xff] %vm884, %v870
    %888 = vst [vmem:[#allocation2 + $0x20] sm:$0xff] %v871
    %889 = vst.msk [vmem:[#allocation2 + $0x28] sm:$0xff] %vm884, %v872
    %890 = vst [vmem:[#allocation2 + $0x30] sm:$0xff] %v873
    %891 = vst.msk [vmem:[#allocation2 + $0x38] sm:$0xff] %vm884, %v874
    %892 = vst [vmem:[#allocation2 + $0x40] sm:$0xff] %v875
    %893 = vst.msk [vmem:[#allocation2 + $0x48] sm:$0xff] %vm884, %v876
    %894 = vst [vmem:[#allocation2 + $0x50] sm:$0xff] %v877
    %895 = vst.msk [vmem:[#allocation2 + $0x58] sm:$0xff] %vm884, %v878
    %896 = vst [vmem:[#allocation2 + $0x60] sm:$0xff] %v879
    %897 = vst.msk [vmem:[#allocation2 + $0x68] sm:$0xff] %vm884, %v880
    %898 = vst [vmem:[#allocation2 + $0x70] sm:$0xff] %v881
    %899 = vst.msk [vmem:[#allocation2 + $0x78] sm:$0xff] %vm884, %v882
    %s900 = scalar_lea.vmem %s0, 128
    %v901 = vld [vmem:[%s900] sm:$0xff]
    %v902 = vld [vmem:[%s900 + $0x8] sm:$0xff]
    %v903 = vld [vmem:[%s900 + $0x10] sm:$0x1]
    %v904 = vld [vmem:[%s900 + $0x18] sm:$0x1]
    %v906 = vsel %vm151, %v903, 0
    %v909 = vsel %vm151, %v904, 0
    %911 = vmatprep.subr.mxu0 0.0
    %912 = vmatpush1.msra.mxu0 0.0
    %913 = vmatprep.subr.mxu0 0.0
    %914 = vmatpush1.msra.mxu0 0.0
    %915 = vmatprep.subr.mxu0 0.0
    %916 = vmatpush1.msra.mxu0 0.0
    %917 = vmatprep.subr.mxu0 0.0
    %918 = vmatpush1.msra.mxu0 0.0
    %919 = vmatprep.subr.mxu0 0.0
    %920 = vmatpush1.msra.mxu0 0.0
    %921 = vmatprep.subr.mxu0 0.0
    %922 = vmatpush1.msra.mxu0 0.0
    %923 = vmatprep.subr.mxu0 0.0
    %924 = vmatpush1.msra.mxu0 0.0
    %925 = vmatprep.subr.mxu0 0.0
    %926 = vmatpush1.msra.mxu0 0.0
    %927 = vmatprep.subr.mxu0 0.0
    %928 = vmatpush1.msra.mxu0 0.0
    %929 = vmatprep.subr.mxu0 0.0
    %930 = vmatpush1.msra.mxu0 0.0
    %931 = vmatprep.subr.mxu0 0.0
    %932 = vmatpush1.msra.mxu0 0.0
    %933 = vmatprep.subr.mxu0 0.0
    %934 = vmatpush1.msra.mxu0 0.0
    %935 = vmatprep.subr.mxu0 0.0
    %936 = vmatpush1.msra.mxu0 0.0
    %937 = vmatprep.subr.mxu0 0.0
    %938 = vmatpush1.msra.mxu0 0.0
    %939 = vmatprep.subr.mxu0 %v909
    %940 = vmatpush1.msra.mxu0 %v906
    %941 = vmatprep.subr.mxu0 %v902
    %942 = vmatpush1.msra.mxu0 %v901
    %943 = vmatprep.subr.mxu0 0.0
    %944 = vmatpush2.msra.mxu0 0.0
    %945 = vmatprep.subr.mxu0 0.0
    %946 = vmatpush2.msra.mxu0 0.0
    %947 = vmatprep.subr.mxu0 0.0
    %948 = vmatpush2.msra.mxu0 0.0
    %949 = vmatprep.subr.mxu0 0.0
    %950 = vmatpush2.msra.mxu0 0.0
    %951 = vmatprep.subr.mxu0 0.0
    %952 = vmatpush2.msra.mxu0 0.0
    %953 = vmatprep.subr.mxu0 0.0
    %954 = vmatpush2.msra.mxu0 0.0
    %955 = vmatprep.subr.mxu0 0.0
    %956 = vmatpush2.msra.mxu0 0.0
    %957 = vmatprep.subr.mxu0 0.0
    %958 = vmatpush2.msra.mxu0 0.0
    %959 = vmatprep.subr.mxu0 0.0
    %960 = vmatpush2.msra.mxu0 0.0
    %961 = vmatprep.subr.mxu0 0.0
    %962 = vmatpush2.msra.mxu0 0.0
    %963 = vmatprep.subr.mxu0 0.0
    %964 = vmatpush2.msra.mxu0 0.0
    %965 = vmatprep.subr.mxu0 0.0
    %966 = vmatpush2.msra.mxu0 0.0
    %967 = vmatprep.subr.mxu0 0.0
    %968 = vmatpush2.msra.mxu0 0.0
    %969 = vmatprep.subr.mxu0 0.0
    %970 = vmatpush2.msra.mxu0 0.0
    %971 = vmatprep.subr.mxu0 0.0
    %972 = vmatpush2.msra.mxu0 0.0
    %973 = vmatprep.subr.mxu0 0.0
    %974 = vmatpush2.msra.mxu0 0.0
    %975 = vmatprep.mubr.f32.mxu0 0.0
    %976 = vmatmul.mubr.f32.gmra.mxu0 %v128
    %v977 = vpop.f32.mrf.mxu0
    %v978 = vadd.f32 0.0, %v977
    %v979 = vpop.f32.mrf.mxu0
    %v980 = vadd.f32 0.0, %v979
    %981 = vmatprep.mubr.f32.mxu0 0.0
    %982 = vmatmul.mubr.f32.gmra.mxu0 %v131
    %v983 = vpop.f32.mrf.mxu0
    %v984 = vadd.f32 0.0, %v983
    %v985 = vpop.f32.mrf.mxu0
    %v986 = vadd.f32 0.0, %v985
    %987 = vmatprep.mubr.f32.mxu0 0.0
    %988 = vmatmul.mubr.f32.gmra.mxu0 %v134
    %v989 = vpop.f32.mrf.mxu0
    %v990 = vadd.f32 0.0, %v989
    %v991 = vpop.f32.mrf.mxu0
    %v992 = vadd.f32 0.0, %v991
    %993 = vmatprep.mubr.f32.mxu0 0.0
    %994 = vmatmul.mubr.f32.gmra.mxu0 %v137
    %v995 = vpop.f32.mrf.mxu0
    %v996 = vadd.f32 0.0, %v995
    %v997 = vpop.f32.mrf.mxu0
    %v998 = vadd.f32 0.0, %v997
    %999 = vmatprep.mubr.f32.mxu0 0.0
    %1000 = vmatmul.mubr.f32.gmra.mxu0 %v140
    %v1001 = vpop.f32.mrf.mxu0
    %v1002 = vadd.f32 0.0, %v1001
    %v1003 = vpop.f32.mrf.mxu0
    %v1004 = vadd.f32 0.0, %v1003
    %1005 = vmatprep.mubr.f32.mxu0 0.0
    %1006 = vmatmul.mubr.f32.gmra.mxu0 %v143
    %v1007 = vpop.f32.mrf.mxu0
    %v1008 = vadd.f32 0.0, %v1007
    %v1009 = vpop.f32.mrf.mxu0
    %v1010 = vadd.f32 0.0, %v1009
    %1011 = vmatprep.mubr.f32.mxu0 0.0
    %1012 = vmatmul.mubr.f32.gmra.mxu0 %v146
    %v1013 = vpop.f32.mrf.mxu0
    %v1014 = vadd.f32 0.0, %v1013
    %v1015 = vpop.f32.mrf.mxu0
    %v1016 = vadd.f32 0.0, %v1015
    %1017 = vmatprep.mubr.f32.mxu0 0.0
    %1018 = vmatmul.mubr.f32.gmra.mxu0 %v149
    %v1019 = vpop.f32.mrf.mxu0
    %v1020 = vadd.f32 0.0, %v1019
    %v1021 = vpop.f32.mrf.mxu0
    %v1022 = vadd.f32 0.0, %v1021
    %1023 = vdwg.mxu0
    %v1024 = vmul.f32 %v978, %v37
    %v1025 = vmul.f32 %v980, %v37
    %v1026 = vmul.f32 %v984, %v42
    %v1027 = vmul.f32 %v986, %v42
    %v1028 = vmul.f32 %v990, %v47
    %v1029 = vmul.f32 %v992, %v47
    %v1030 = vmul.f32 %v996, %v52
    %v1031 = vmul.f32 %v998, %v52
    %v1032 = vmul.f32 %v1002, %v57
    %v1033 = vmul.f32 %v1004, %v57
    %v1034 = vmul.f32 %v1008, %v62
    %v1035 = vmul.f32 %v1010, %v62
    %v1036 = vmul.f32 %v1014, %v67
    %v1037 = vmul.f32 %v1016, %v67
    %v1038 = vmul.f32 %v1020, %v72
    %v1039 = vmul.f32 %v1022, %v72
    %v1040 = vadd.f32 %v1024, %v85
    %v1041 = vadd.f32 %v1025, %v85
    %v1042 = vadd.f32 %v1026, %v90
    %v1043 = vadd.f32 %v1027, %v90
    %v1044 = vadd.f32 %v1028, %v95
    %v1045 = vadd.f32 %v1029, %v95
    %v1046 = vadd.f32 %v1030, %v100
    %v1047 = vadd.f32 %v1031, %v100
    %v1048 = vadd.f32 %v1032, %v105
    %v1049 = vadd.f32 %v1033, %v105
    %v1050 = vadd.f32 %v1034, %v110
    %v1051 = vadd.f32 %v1035, %v110
    %v1052 = vadd.f32 %v1036, %v115
    %v1053 = vadd.f32 %v1037, %v115
    %v1054 = vadd.f32 %v1038, %v120
    %v1055 = vadd.f32 %v1039, %v120
    %v1056 = vmax.f32 %v1040, 0.0
    %v1057 = vmax.f32 %v1041, 0.0
    %v1058 = vmax.f32 %v1042, 0.0
    %v1059 = vmax.f32 %v1043, 0.0
    %v1060 = vmax.f32 %v1044, 0.0
    %v1061 = vmax.f32 %v1045, 0.0
    %v1062 = vmax.f32 %v1046, 0.0
    %v1063 = vmax.f32 %v1047, 0.0
    %v1064 = vmax.f32 %v1048, 0.0
    %v1065 = vmax.f32 %v1049, 0.0
    %v1066 = vmax.f32 %v1050, 0.0
    %v1067 = vmax.f32 %v1051, 0.0
    %v1068 = vmax.f32 %v1052, 0.0
    %v1069 = vmax.f32 %v1053, 0.0
    %v1070 = vmax.f32 %v1054, 0.0
    %v1071 = vmax.f32 %v1055, 0.0
    %s1072 = scalar_lea.vmem %s0, 160
    %v1073 = vld [vmem:[%s1072] sm:$0xff]
    %v1074 = vld [vmem:[%s1072 + $0x8] sm:$0xff]
    %v1075 = vld [vmem:[%s1072 + $0x10] sm:$0x1]
    %v1076 = vld [vmem:[%s1072 + $0x18] sm:$0x1]
    %v1078 = vsel %vm151, %v1075, 0
    %v1081 = vsel %vm151, %v1076, 0
    %1083 = vmatprep.subr.mxu0 0.0
    %1084 = vmatpush1.msra.mxu0 0.0
    %1085 = vmatprep.subr.mxu0 0.0
    %1086 = vmatpush1.msra.mxu0 0.0
    %1087 = vmatprep.subr.mxu0 0.0
    %1088 = vmatpush1.msra.mxu0 0.0
    %1089 = vmatprep.subr.mxu0 0.0
    %1090 = vmatpush1.msra.mxu0 0.0
    %1091 = vmatprep.subr.mxu0 0.0
    %1092 = vmatpush1.msra.mxu0 0.0
    %1093 = vmatprep.subr.mxu0 0.0
    %1094 = vmatpush1.msra.mxu0 0.0
    %1095 = vmatprep.subr.mxu0 0.0
    %1096 = vmatpush1.msra.mxu0 0.0
    %1097 = vmatprep.subr.mxu0 0.0
    %1098 = vmatpush1.msra.mxu0 0.0
    %1099 = vmatprep.subr.mxu0 0.0
    %1100 = vmatpush1.msra.mxu0 0.0
    %1101 = vmatprep.subr.mxu0 0.0
    %1102 = vmatpush1.msra.mxu0 0.0
    %1103 = vmatprep.subr.mxu0 0.0
    %1104 = vmatpush1.msra.mxu0 0.0
    %1105 = vmatprep.subr.mxu0 0.0
    %1106 = vmatpush1.msra.mxu0 0.0
    %1107 = vmatprep.subr.mxu0 0.0
    %1108 = vmatpush1.msra.mxu0 0.0
    %1109 = vmatprep.subr.mxu0 0.0
    %1110 = vmatpush1.msra.mxu0 0.0
    %1111 = vmatprep.subr.mxu0 %v1081
    %1112 = vmatpush1.msra.mxu0 %v1078
    %1113 = vmatprep.subr.mxu0 %v1074
    %1114 = vmatpush1.msra.mxu0 %v1073
    %1115 = vmatprep.subr.mxu0 0.0
    %1116 = vmatpush2.msra.mxu0 0.0
    %1117 = vmatprep.subr.mxu0 0.0
    %1118 = vmatpush2.msra.mxu0 0.0
    %1119 = vmatprep.subr.mxu0 0.0
    %1120 = vmatpush2.msra.mxu0 0.0
    %1121 = vmatprep.subr.mxu0 0.0
    %1122 = vmatpush2.msra.mxu0 0.0
    %1123 = vmatprep.subr.mxu0 0.0
    %1124 = vmatpush2.msra.mxu0 0.0
    %1125 = vmatprep.subr.mxu0 0.0
    %1126 = vmatpush2.msra.mxu0 0.0
    %1127 = vmatprep.subr.mxu0 0.0
    %1128 = vmatpush2.msra.mxu0 0.0
    %1129 = vmatprep.subr.mxu0 0.0
    %1130 = vmatpush2.msra.mxu0 0.0
    %1131 = vmatprep.subr.mxu0 0.0
    %1132 = vmatpush2.msra.mxu0 0.0
    %1133 = vmatprep.subr.mxu0 0.0
    %1134 = vmatpush2.msra.mxu0 0.0
    %1135 = vmatprep.subr.mxu0 0.0
    %1136 = vmatpush2.msra.mxu0 0.0
    %1137 = vmatprep.subr.mxu0 0.0
    %1138 = vmatpush2.msra.mxu0 0.0
    %1139 = vmatprep.subr.mxu0 0.0
    %1140 = vmatpush2.msra.mxu0 0.0
    %1141 = vmatprep.subr.mxu0 0.0
    %1142 = vmatpush2.msra.mxu0 0.0
    %1143 = vmatprep.subr.mxu0 0.0
    %1144 = vmatpush2.msra.mxu0 0.0
    %1145 = vmatprep.subr.mxu0 0.0
    %1146 = vmatpush2.msra.mxu0 0.0
    %1147 = vmatprep.mubr.f32.mxu0 0.0
    %1148 = vmatmul.mubr.f32.gmra.mxu0 %v128
    %v1149 = vpop.f32.mrf.mxu0
    %v1150 = vadd.f32 0.0, %v1149
    %v1151 = vpop.f32.mrf.mxu0
    %v1152 = vadd.f32 0.0, %v1151
    %1153 = vmatprep.mubr.f32.mxu0 0.0
    %1154 = vmatmul.mubr.f32.gmra.mxu0 %v131
    %v1155 = vpop.f32.mrf.mxu0
    %v1156 = vadd.f32 0.0, %v1155
    %v1157 = vpop.f32.mrf.mxu0
    %v1158 = vadd.f32 0.0, %v1157
    %1159 = vmatprep.mubr.f32.mxu0 0.0
    %1160 = vmatmul.mubr.f32.gmra.mxu0 %v134
    %v1161 = vpop.f32.mrf.mxu0
    %v1162 = vadd.f32 0.0, %v1161
    %v1163 = vpop.f32.mrf.mxu0
    %v1164 = vadd.f32 0.0, %v1163
    %1165 = vmatprep.mubr.f32.mxu0 0.0
    %1166 = vmatmul.mubr.f32.gmra.mxu0 %v137
    %v1167 = vpop.f32.mrf.mxu0
    %v1168 = vadd.f32 0.0, %v1167
    %v1169 = vpop.f32.mrf.mxu0
    %v1170 = vadd.f32 0.0, %v1169
    %1171 = vmatprep.mubr.f32.mxu0 0.0
    %1172 = vmatmul.mubr.f32.gmra.mxu0 %v140
    %v1173 = vpop.f32.mrf.mxu0
    %v1174 = vadd.f32 0.0, %v1173
    %v1175 = vpop.f32.mrf.mxu0
    %v1176 = vadd.f32 0.0, %v1175
    %1177 = vmatprep.mubr.f32.mxu0 0.0
    %1178 = vmatmul.mubr.f32.gmra.mxu0 %v143
    %v1179 = vpop.f32.mrf.mxu0
    %v1180 = vadd.f32 0.0, %v1179
    %v1181 = vpop.f32.mrf.mxu0
    %v1182 = vadd.f32 0.0, %v1181
    %1183 = vmatprep.mubr.f32.mxu0 0.0
    %1184 = vmatmul.mubr.f32.gmra.mxu0 %v146
    %v1185 = vpop.f32.mrf.mxu0
    %v1186 = vadd.f32 0.0, %v1185
    %v1187 = vpop.f32.mrf.mxu0
    %v1188 = vadd.f32 0.0, %v1187
    %1189 = vmatprep.mubr.f32.mxu0 0.0
    %1190 = vmatmul.mubr.f32.gmra.mxu0 %v149
    %v1191 = vpop.f32.mrf.mxu0
    %v1192 = vadd.f32 0.0, %v1191
    %v1193 = vpop.f32.mrf.mxu0
    %v1194 = vadd.f32 0.0, %v1193
    %1195 = vdwg.mxu0
    %v1196 = vmul.f32 %v1150, %v37
    %v1197 = vmul.f32 %v1152, %v37
    %v1198 = vmul.f32 %v1156, %v42
    %v1199 = vmul.f32 %v1158, %v42
    %v1200 = vmul.f32 %v1162, %v47
    %v1201 = vmul.f32 %v1164, %v47
    %v1202 = vmul.f32 %v1168, %v52
    %v1203 = vmul.f32 %v1170, %v52
    %v1204 = vmul.f32 %v1174, %v57
    %v1205 = vmul.f32 %v1176, %v57
    %v1206 = vmul.f32 %v1180, %v62
    %v1207 = vmul.f32 %v1182, %v62
    %v1208 = vmul.f32 %v1186, %v67
    %v1209 = vmul.f32 %v1188, %v67
    %v1210 = vmul.f32 %v1192, %v72
    %v1211 = vmul.f32 %v1194, %v72
    %v1212 = vadd.f32 %v1196, %v85
    %v1213 = vadd.f32 %v1197, %v85
    %v1214 = vadd.f32 %v1198, %v90
    %v1215 = vadd.f32 %v1199, %v90
    %v1216 = vadd.f32 %v1200, %v95
    %v1217 = vadd.f32 %v1201, %v95
    %v1218 = vadd.f32 %v1202, %v100
    %v1219 = vadd.f32 %v1203, %v100
    %v1220 = vadd.f32 %v1204, %v105
    %v1221 = vadd.f32 %v1205, %v105
    %v1222 = vadd.f32 %v1206, %v110
    %v1223 = vadd.f32 %v1207, %v110
    %v1224 = vadd.f32 %v1208, %v115
    %v1225 = vadd.f32 %v1209, %v115
    %v1226 = vadd.f32 %v1210, %v120
    %v1227 = vadd.f32 %v1211, %v120
    %v1228 = vmax.f32 %v1212, 0.0
    %v1229 = vmax.f32 %v1213, 0.0
    %v1230 = vmax.f32 %v1214, 0.0
    %v1231 = vmax.f32 %v1215, 0.0
    %v1232 = vmax.f32 %v1216, 0.0
    %v1233 = vmax.f32 %v1217, 0.0
    %v1234 = vmax.f32 %v1218, 0.0
    %v1235 = vmax.f32 %v1219, 0.0
    %v1236 = vmax.f32 %v1220, 0.0
    %v1237 = vmax.f32 %v1221, 0.0
    %v1238 = vmax.f32 %v1222, 0.0
    %v1239 = vmax.f32 %v1223, 0.0
    %v1240 = vmax.f32 %v1224, 0.0
    %v1241 = vmax.f32 %v1225, 0.0
    %v1242 = vmax.f32 %v1226, 0.0
    %v1243 = vmax.f32 %v1227, 0.0
    %v1244 = vmax.f32 %v1056, %v1228
    %v1245 = vmax.f32 %v1057, %v1229
    %v1246 = vmax.f32 %v1058, %v1230
    %v1247 = vmax.f32 %v1059, %v1231
    %v1248 = vmax.f32 %v1060, %v1232
    %v1249 = vmax.f32 %v1061, %v1233
    %v1250 = vmax.f32 %v1062, %v1234
    %v1251 = vmax.f32 %v1063, %v1235
    %v1252 = vmax.f32 %v1064, %v1236
    %v1253 = vmax.f32 %v1065, %v1237
    %v1254 = vmax.f32 %v1066, %v1238
    %v1255 = vmax.f32 %v1067, %v1239
    %v1256 = vmax.f32 %v1068, %v1240
    %v1257 = vmax.f32 %v1069, %v1241
    %v1258 = vmax.f32 %v1070, %v1242
    %v1259 = vmax.f32 %v1071, %v1243
    %s1260 = scalar_lea.vmem %s0, 192
    %v1261 = vld [vmem:[%s1260] sm:$0xff]
    %v1262 = vld [vmem:[%s1260 + $0x8] sm:$0xff]
    %v1263 = vld [vmem:[%s1260 + $0x10] sm:$0x1]
    %v1264 = vld [vmem:[%s1260 + $0x18] sm:$0x1]
    %v1266 = vsel %vm151, %v1263, 0
    %v1269 = vsel %vm151, %v1264, 0
    %1271 = vmatprep.subr.mxu0 0.0
    %1272 = vmatpush1.msra.mxu0 0.0
    %1273 = vmatprep.subr.mxu0 0.0
    %1274 = vmatpush1.msra.mxu0 0.0
    %1275 = vmatprep.subr.mxu0 0.0
    %1276 = vmatpush1.msra.mxu0 0.0
    %1277 = vmatprep.subr.mxu0 0.0
    %1278 = vmatpush1.msra.mxu0 0.0
    %1279 = vmatprep.subr.mxu0 0.0
    %1280 = vmatpush1.msra.mxu0 0.0
    %1281 = vmatprep.subr.mxu0 0.0
    %1282 = vmatpush1.msra.mxu0 0.0
    %1283 = vmatprep.subr.mxu0 0.0
    %1284 = vmatpush1.msra.mxu0 0.0
    %1285 = vmatprep.subr.mxu0 0.0
    %1286 = vmatpush1.msra.mxu0 0.0
    %1287 = vmatprep.subr.mxu0 0.0
    %1288 = vmatpush1.msra.mxu0 0.0
    %1289 = vmatprep.subr.mxu0 0.0
    %1290 = vmatpush1.msra.mxu0 0.0
    %1291 = vmatprep.subr.mxu0 0.0
    %1292 = vmatpush1.msra.mxu0 0.0
    %1293 = vmatprep.subr.mxu0 0.0
    %1294 = vmatpush1.msra.mxu0 0.0
    %1295 = vmatprep.subr.mxu0 0.0
    %1296 = vmatpush1.msra.mxu0 0.0
    %1297 = vmatprep.subr.mxu0 0.0
    %1298 = vmatpush1.msra.mxu0 0.0
    %1299 = vmatprep.subr.mxu0 %v1269
    %1300 = vmatpush1.msra.mxu0 %v1266
    %1301 = vmatprep.subr.mxu0 %v1262
    %1302 = vmatpush1.msra.mxu0 %v1261
    %1303 = vmatprep.subr.mxu0 0.0
    %1304 = vmatpush2.msra.mxu0 0.0
    %1305 = vmatprep.subr.mxu0 0.0
    %1306 = vmatpush2.msra.mxu0 0.0
    %1307 = vmatprep.subr.mxu0 0.0
    %1308 = vmatpush2.msra.mxu0 0.0
    %1309 = vmatprep.subr.mxu0 0.0
    %1310 = vmatpush2.msra.mxu0 0.0
    %1311 = vmatprep.subr.mxu0 0.0
    %1312 = vmatpush2.msra.mxu0 0.0
    %1313 = vmatprep.subr.mxu0 0.0
    %1314 = vmatpush2.msra.mxu0 0.0
    %1315 = vmatprep.subr.mxu0 0.0
    %1316 = vmatpush2.msra.mxu0 0.0
    %1317 = vmatprep.subr.mxu0 0.0
    %1318 = vmatpush2.msra.mxu0 0.0
    %1319 = vmatprep.subr.mxu0 0.0
    %1320 = vmatpush2.msra.mxu0 0.0
    %1321 = vmatprep.subr.mxu0 0.0
    %1322 = vmatpush2.msra.mxu0 0.0
    %1323 = vmatprep.subr.mxu0 0.0
    %1324 = vmatpush2.msra.mxu0 0.0
    %1325 = vmatprep.subr.mxu0 0.0
    %1326 = vmatpush2.msra.mxu0 0.0
    %1327 = vmatprep.subr.mxu0 0.0
    %1328 = vmatpush2.msra.mxu0 0.0
    %1329 = vmatprep.subr.mxu0 0.0
    %1330 = vmatpush2.msra.mxu0 0.0
    %1331 = vmatprep.subr.mxu0 0.0
    %1332 = vmatpush2.msra.mxu0 0.0
    %1333 = vmatprep.subr.mxu0 0.0
    %1334 = vmatpush2.msra.mxu0 0.0
    %1335 = vmatprep.mubr.f32.mxu0 0.0
    %1336 = vmatmul.mubr.f32.gmra.mxu0 %v128
    %v1337 = vpop.f32.mrf.mxu0
    %v1338 = vadd.f32 0.0, %v1337
    %v1339 = vpop.f32.mrf.mxu0
    %v1340 = vadd.f32 0.0, %v1339
    %1341 = vmatprep.mubr.f32.mxu0 0.0
    %1342 = vmatmul.mubr.f32.gmra.mxu0 %v131
    %v1343 = vpop.f32.mrf.mxu0
    %v1344 = vadd.f32 0.0, %v1343
    %v1345 = vpop.f32.mrf.mxu0
    %v1346 = vadd.f32 0.0, %v1345
    %1347 = vmatprep.mubr.f32.mxu0 0.0
    %1348 = vmatmul.mubr.f32.gmra.mxu0 %v134
    %v1349 = vpop.f32.mrf.mxu0
    %v1350 = vadd.f32 0.0, %v1349
    %v1351 = vpop.f32.mrf.mxu0
    %v1352 = vadd.f32 0.0, %v1351
    %1353 = vmatprep.mubr.f32.mxu0 0.0
    %1354 = vmatmul.mubr.f32.gmra.mxu0 %v137
    %v1355 = vpop.f32.mrf.mxu0
    %v1356 = vadd.f32 0.0, %v1355
    %v1357 = vpop.f32.mrf.mxu0
    %v1358 = vadd.f32 0.0, %v1357
    %1359 = vmatprep.mubr.f32.mxu0 0.0
    %1360 = vmatmul.mubr.f32.gmra.mxu0 %v140
    %v1361 = vpop.f32.mrf.mxu0
    %v1362 = vadd.f32 0.0, %v1361
    %v1363 = vpop.f32.mrf.mxu0
    %v1364 = vadd.f32 0.0, %v1363
    %1365 = vmatprep.mubr.f32.mxu0 0.0
    %1366 = vmatmul.mubr.f32.gmra.mxu0 %v143
    %v1367 = vpop.f32.mrf.mxu0
    %v1368 = vadd.f32 0.0, %v1367
    %v1369 = vpop.f32.mrf.mxu0
    %v1370 = vadd.f32 0.0, %v1369
    %1371 = vmatprep.mubr.f32.mxu0 0.0
    %1372 = vmatmul.mubr.f32.gmra.mxu0 %v146
    %v1373 = vpop.f32.mrf.mxu0
    %v1374 = vadd.f32 0.0, %v1373
    %v1375 = vpop.f32.mrf.mxu0
    %v1376 = vadd.f32 0.0, %v1375
    %1377 = vmatprep.mubr.f32.mxu0 0.0
    %1378 = vmatmul.mubr.f32.gmra.mxu0 %v149
    %v1379 = vpop.f32.mrf.mxu0
    %v1380 = vadd.f32 0.0, %v1379
    %v1381 = vpop.f32.mrf.mxu0
    %v1382 = vadd.f32 0.0, %v1381
    %1383 = vdwg.mxu0
    %v1384 = vmul.f32 %v1338, %v37
    %v1385 = vmul.f32 %v1340, %v37
    %v1386 = vmul.f32 %v1344, %v42
    %v1387 = vmul.f32 %v1346, %v42
    %v1388 = vmul.f32 %v1350, %v47
    %v1389 = vmul.f32 %v1352, %v47
    %v1390 = vmul.f32 %v1356, %v52
    %v1391 = vmul.f32 %v1358, %v52
    %v1392 = vmul.f32 %v1362, %v57
    %v1393 = vmul.f32 %v1364, %v57
    %v1394 = vmul.f32 %v1368, %v62
    %v1395 = vmul.f32 %v1370, %v62
    %v1396 = vmul.f32 %v1374, %v67
    %v1397 = vmul.f32 %v1376, %v67
    %v1398 = vmul.f32 %v1380, %v72
    %v1399 = vmul.f32 %v1382, %v72
    %v1400 = vadd.f32 %v1384, %v85
    %v1401 = vadd.f32 %v1385, %v85
    %v1402 = vadd.f32 %v1386, %v90
    %v1403 = vadd.f32 %v1387, %v90
    %v1404 = vadd.f32 %v1388, %v95
    %v1405 = vadd.f32 %v1389, %v95
    %v1406 = vadd.f32 %v1390, %v100
    %v1407 = vadd.f32 %v1391, %v100
    %v1408 = vadd.f32 %v1392, %v105
    %v1409 = vadd.f32 %v1393, %v105
    %v1410 = vadd.f32 %v1394, %v110
    %v1411 = vadd.f32 %v1395, %v110
    %v1412 = vadd.f32 %v1396, %v115
    %v1413 = vadd.f32 %v1397, %v115
    %v1414 = vadd.f32 %v1398, %v120
    %v1415 = vadd.f32 %v1399, %v120
    %v1416 = vmax.f32 %v1400, 0.0
    %v1417 = vmax.f32 %v1401, 0.0
    %v1418 = vmax.f32 %v1402, 0.0
    %v1419 = vmax.f32 %v1403, 0.0
    %v1420 = vmax.f32 %v1404, 0.0
    %v1421 = vmax.f32 %v1405, 0.0
    %v1422 = vmax.f32 %v1406, 0.0
    %v1423 = vmax.f32 %v1407, 0.0
    %v1424 = vmax.f32 %v1408, 0.0
    %v1425 = vmax.f32 %v1409, 0.0
    %v1426 = vmax.f32 %v1410, 0.0
    %v1427 = vmax.f32 %v1411, 0.0
    %v1428 = vmax.f32 %v1412, 0.0
    %v1429 = vmax.f32 %v1413, 0.0
    %v1430 = vmax.f32 %v1414, 0.0
    %v1431 = vmax.f32 %v1415, 0.0
    %v1432 = vmax.f32 %v1244, %v1416
    %v1433 = vmax.f32 %v1245, %v1417
    %v1434 = vmax.f32 %v1246, %v1418
    %v1435 = vmax.f32 %v1247, %v1419
    %v1436 = vmax.f32 %v1248, %v1420
    %v1437 = vmax.f32 %v1249, %v1421
    %v1438 = vmax.f32 %v1250, %v1422
    %v1439 = vmax.f32 %v1251, %v1423
    %v1440 = vmax.f32 %v1252, %v1424
    %v1441 = vmax.f32 %v1253, %v1425
    %v1442 = vmax.f32 %v1254, %v1426
    %v1443 = vmax.f32 %v1255, %v1427
    %v1444 = vmax.f32 %v1256, %v1428
    %v1445 = vmax.f32 %v1257, %v1429
    %v1446 = vmax.f32 %v1258, %v1430
    %v1447 = vmax.f32 %v1259, %v1431
    %s1448 = scalar_lea.vmem %s0, 224
    %v1449 = vld [vmem:[%s1448] sm:$0xff]
    %v1450 = vld [vmem:[%s1448 + $0x8] sm:$0xff]
    %v1451 = vld [vmem:[%s1448 + $0x10] sm:$0x1]
    %v1452 = vld [vmem:[%s1448 + $0x18] sm:$0x1]
    %v1454 = vsel %vm151, %v1451, 0
    %v1457 = vsel %vm151, %v1452, 0
    %1459 = vmatprep.subr.mxu0 0.0
    %1460 = vmatpush1.msra.mxu0 0.0
    %1461 = vmatprep.subr.mxu0 0.0
    %1462 = vmatpush1.msra.mxu0 0.0
    %1463 = vmatprep.subr.mxu0 0.0
    %1464 = vmatpush1.msra.mxu0 0.0
    %1465 = vmatprep.subr.mxu0 0.0
    %1466 = vmatpush1.msra.mxu0 0.0
    %1467 = vmatprep.subr.mxu0 0.0
    %1468 = vmatpush1.msra.mxu0 0.0
    %1469 = vmatprep.subr.mxu0 0.0
    %1470 = vmatpush1.msra.mxu0 0.0
    %1471 = vmatprep.subr.mxu0 0.0
    %1472 = vmatpush1.msra.mxu0 0.0
    %1473 = vmatprep.subr.mxu0 0.0
    %1474 = vmatpush1.msra.mxu0 0.0
    %1475 = vmatprep.subr.mxu0 0.0
    %1476 = vmatpush1.msra.mxu0 0.0
    %1477 = vmatprep.subr.mxu0 0.0
    %1478 = vmatpush1.msra.mxu0 0.0
    %1479 = vmatprep.subr.mxu0 0.0
    %1480 = vmatpush1.msra.mxu0 0.0
    %1481 = vmatprep.subr.mxu0 0.0
    %1482 = vmatpush1.msra.mxu0 0.0
    %1483 = vmatprep.subr.mxu0 0.0
    %1484 = vmatpush1.msra.mxu0 0.0
    %1485 = vmatprep.subr.mxu0 0.0
    %1486 = vmatpush1.msra.mxu0 0.0
    %1487 = vmatprep.subr.mxu0 %v1457
    %1488 = vmatpush1.msra.mxu0 %v1454
    %1489 = vmatprep.subr.mxu0 %v1450
    %1490 = vmatpush1.msra.mxu0 %v1449
    %1491 = vmatprep.subr.mxu0 0.0
    %1492 = vmatpush2.msra.mxu0 0.0
    %1493 = vmatprep.subr.mxu0 0.0
    %1494 = vmatpush2.msra.mxu0 0.0
    %1495 = vmatprep.subr.mxu0 0.0
    %1496 = vmatpush2.msra.mxu0 0.0
    %1497 = vmatprep.subr.mxu0 0.0
    %1498 = vmatpush2.msra.mxu0 0.0
    %1499 = vmatprep.subr.mxu0 0.0
    %1500 = vmatpush2.msra.mxu0 0.0
    %1501 = vmatprep.subr.mxu0 0.0
    %1502 = vmatpush2.msra.mxu0 0.0
    %1503 = vmatprep.subr.mxu0 0.0
    %1504 = vmatpush2.msra.mxu0 0.0
    %1505 = vmatprep.subr.mxu0 0.0
    %1506 = vmatpush2.msra.mxu0 0.0
    %1507 = vmatprep.subr.mxu0 0.0
    %1508 = vmatpush2.msra.mxu0 0.0
    %1509 = vmatprep.subr.mxu0 0.0
    %1510 = vmatpush2.msra.mxu0 0.0
    %1511 = vmatprep.subr.mxu0 0.0
    %1512 = vmatpush2.msra.mxu0 0.0
    %1513 = vmatprep.subr.mxu0 0.0
    %1514 = vmatpush2.msra.mxu0 0.0
    %1515 = vmatprep.subr.mxu0 0.0
    %1516 = vmatpush2.msra.mxu0 0.0
    %1517 = vmatprep.subr.mxu0 0.0
    %1518 = vmatpush2.msra.mxu0 0.0
    %1519 = vmatprep.subr.mxu0 0.0
    %1520 = vmatpush2.msra.mxu0 0.0
    %1521 = vmatprep.subr.mxu0 0.0
    %1522 = vmatpush2.msra.mxu0 0.0
    %1523 = vmatprep.mubr.f32.mxu0 0.0
    %1524 = vmatmul.mubr.f32.gmra.mxu0 %v128
    %v1525 = vpop.f32.mrf.mxu0
    %v1526 = vadd.f32 0.0, %v1525
    %v1527 = vpop.f32.mrf.mxu0
    %v1528 = vadd.f32 0.0, %v1527
    %1529 = vmatprep.mubr.f32.mxu0 0.0
    %1530 = vmatmul.mubr.f32.gmra.mxu0 %v131
    %v1531 = vpop.f32.mrf.mxu0
    %v1532 = vadd.f32 0.0, %v1531
    %v1533 = vpop.f32.mrf.mxu0
    %v1534 = vadd.f32 0.0, %v1533
    %1535 = vmatprep.mubr.f32.mxu0 0.0
    %1536 = vmatmul.mubr.f32.gmra.mxu0 %v134
    %v1537 = vpop.f32.mrf.mxu0
    %v1538 = vadd.f32 0.0, %v1537
    %v1539 = vpop.f32.mrf.mxu0
    %v1540 = vadd.f32 0.0, %v1539
    %1541 = vmatprep.mubr.f32.mxu0 0.0
    %1542 = vmatmul.mubr.f32.gmra.mxu0 %v137
    %v1543 = vpop.f32.mrf.mxu0
    %v1544 = vadd.f32 0.0, %v1543
    %v1545 = vpop.f32.mrf.mxu0
    %v1546 = vadd.f32 0.0, %v1545
    %1547 = vmatprep.mubr.f32.mxu0 0.0
    %1548 = vmatmul.mubr.f32.gmra.mxu0 %v140
    %v1549 = vpop.f32.mrf.mxu0
    %v1550 = vadd.f32 0.0, %v1549
    %v1551 = vpop.f32.mrf.mxu0
    %v1552 = vadd.f32 0.0, %v1551
    %1553 = vmatprep.mubr.f32.mxu0 0.0
    %1554 = vmatmul.mubr.f32.gmra.mxu0 %v143
    %v1555 = vpop.f32.mrf.mxu0
    %v1556 = vadd.f32 0.0, %v1555
    %v1557 = vpop.f32.mrf.mxu0
    %v1558 = vadd.f32 0.0, %v1557
    %1559 = vmatprep.mubr.f32.mxu0 0.0
    %1560 = vmatmul.mubr.f32.gmra.mxu0 %v146
    %v1561 = vpop.f32.mrf.mxu0
    %v1562 = vadd.f32 0.0, %v1561
    %v1563 = vpop.f32.mrf.mxu0
    %v1564 = vadd.f32 0.0, %v1563
    %1565 = vmatprep.mubr.f32.mxu0 0.0
    %1566 = vmatmul.mubr.f32.gmra.mxu0 %v149
    %v1567 = vpop.f32.mrf.mxu0
    %v1568 = vadd.f32 0.0, %v1567
    %v1569 = vpop.f32.mrf.mxu0
    %v1570 = vadd.f32 0.0, %v1569
    %1571 = vdwg.mxu0
    %v1572 = vmul.f32 %v1526, %v37
    %v1573 = vmul.f32 %v1528, %v37
    %v1574 = vmul.f32 %v1532, %v42
    %v1575 = vmul.f32 %v1534, %v42
    %v1576 = vmul.f32 %v1538, %v47
    %v1577 = vmul.f32 %v1540, %v47
    %v1578 = vmul.f32 %v1544, %v52
    %v1579 = vmul.f32 %v1546, %v52
    %v1580 = vmul.f32 %v1550, %v57
    %v1581 = vmul.f32 %v1552, %v57
    %v1582 = vmul.f32 %v1556, %v62
    %v1583 = vmul.f32 %v1558, %v62
    %v1584 = vmul.f32 %v1562, %v67
    %v1585 = vmul.f32 %v1564, %v67
    %v1586 = vmul.f32 %v1568, %v72
    %v1587 = vmul.f32 %v1570, %v72
    %v1588 = vadd.f32 %v1572, %v85
    %v1589 = vadd.f32 %v1573, %v85
    %v1590 = vadd.f32 %v1574, %v90
    %v1591 = vadd.f32 %v1575, %v90
    %v1592 = vadd.f32 %v1576, %v95
    %v1593 = vadd.f32 %v1577, %v95
    %v1594 = vadd.f32 %v1578, %v100
    %v1595 = vadd.f32 %v1579, %v100
    %v1596 = vadd.f32 %v1580, %v105
    %v1597 = vadd.f32 %v1581, %v105
    %v1598 = vadd.f32 %v1582, %v110
    %v1599 = vadd.f32 %v1583, %v110
    %v1600 = vadd.f32 %v1584, %v115
    %v1601 = vadd.f32 %v1585, %v115
    %v1602 = vadd.f32 %v1586, %v120
    %v1603 = vadd.f32 %v1587, %v120
    %v1604 = vmax.f32 %v1588, 0.0
    %v1605 = vmax.f32 %v1589, 0.0
    %v1606 = vmax.f32 %v1590, 0.0
    %v1607 = vmax.f32 %v1591, 0.0
    %v1608 = vmax.f32 %v1592, 0.0
    %v1609 = vmax.f32 %v1593, 0.0
    %v1610 = vmax.f32 %v1594, 0.0
    %v1611 = vmax.f32 %v1595, 0.0
    %v1612 = vmax.f32 %v1596, 0.0
    %v1613 = vmax.f32 %v1597, 0.0
    %v1614 = vmax.f32 %v1598, 0.0
    %v1615 = vmax.f32 %v1599, 0.0
    %v1616 = vmax.f32 %v1600, 0.0
    %v1617 = vmax.f32 %v1601, 0.0
    %v1618 = vmax.f32 %v1602, 0.0
    %v1619 = vmax.f32 %v1603, 0.0
    %v1620 = vmax.f32 %v1432, %v1604
    %v1621 = vmax.f32 %v1433, %v1605
    %v1622 = vmax.f32 %v1434, %v1606
    %v1623 = vmax.f32 %v1435, %v1607
    %v1624 = vmax.f32 %v1436, %v1608
    %v1625 = vmax.f32 %v1437, %v1609
    %v1626 = vmax.f32 %v1438, %v1610
    %v1627 = vmax.f32 %v1439, %v1611
    %v1628 = vmax.f32 %v1440, %v1612
    %v1629 = vmax.f32 %v1441, %v1613
    %v1630 = vmax.f32 %v1442, %v1614
    %v1631 = vmax.f32 %v1443, %v1615
    %v1632 = vmax.f32 %v1444, %v1616
    %v1633 = vmax.f32 %v1445, %v1617
    %v1634 = vmax.f32 %v1446, %v1618
    %v1635 = vmax.f32 %v1447, %v1619
    %s1636 = scalar_lea.vmem [#allocation2], 128
    %1637 = vst [vmem:[%s1636] sm:$0xff] %v1620
    %1638 = vst.msk [vmem:[%s1636 + $0x8] sm:$0xff] %vm884, %v1621
    %1639 = vst [vmem:[%s1636 + $0x10] sm:$0xff] %v1622
    %1640 = vst.msk [vmem:[%s1636 + $0x18] sm:$0xff] %vm884, %v1623
    %1641 = vst [vmem:[%s1636 + $0x20] sm:$0xff] %v1624
    %1642 = vst.msk [vmem:[%s1636 + $0x28] sm:$0xff] %vm884, %v1625
    %1643 = vst [vmem:[%s1636 + $0x30] sm:$0xff] %v1626
    %1644 = vst.msk [vmem:[%s1636 + $0x38] sm:$0xff] %vm884, %v1627
    %1645 = vst [vmem:[%s1636 + $0x40] sm:$0xff] %v1628
    %1646 = vst.msk [vmem:[%s1636 + $0x48] sm:$0xff] %vm884, %v1629
    %1647 = vst [vmem:[%s1636 + $0x50] sm:$0xff] %v1630
    %1648 = vst.msk [vmem:[%s1636 + $0x58] sm:$0xff] %vm884, %v1631
    %1649 = vst [vmem:[%s1636 + $0x60] sm:$0xff] %v1632
    %1650 = vst.msk [vmem:[%s1636 + $0x68] sm:$0xff] %vm884, %v1633
    %1651 = vst [vmem:[%s1636 + $0x70] sm:$0xff] %v1634
    %1652 = vst.msk [vmem:[%s1636 + $0x78] sm:$0xff] %vm884, %v1635
    // Predicated region
    $region18: #{tpu_custom_call.1} parent=1 // pred_check
      _
    $region19: #{tpu_custom_call.1} parent=1 // pred_check_branch
      %1654 = sbr.rel (0) target = $region21
    $region20: #{tpu_custom_call.1} parent=1 // pred_region
      %s1656 = ssub.s32 4096, 4096
      %1657 = vsyncadd [#allocation3], %s1656
      %s1658 = sshll.u32 [#allocation2], 4
      %s1659 = int_to_ptr.vmem [resolvable:$true] %s1658
      %1664 = dma.vmem_to_hbm [thread:$0]  %s1659, 4096, %s4, [#allocation3], 256, 256, 16
    $region21: #{tpu_custom_call.1} parent=1 // pred_fallthru
      _
    // Predicated region
    $region22: #{tpu_custom_call.1} parent=1 // pred_check
      _
    $region23: #{tpu_custom_call.1} parent=1 // pred_check_branch
      %1666 = sbr.rel (0) target = $region25
    $region24: #{tpu_custom_call.1} parent=1 // pred_region
      %1667 = dma.done [#allocation3], 4096
    $region25: #{tpu_custom_call.1} parent=1 // pred_fallthru
      _
    %1668 = vsyncpa [#allocation3], 1

</llo_original>
